<compile_context>
chip_gen: v5e
topology: v5e:2x2
jax: 0.10.0
libtpu: 0.0.40
codegen_flags: <defaults>
</compile_context>

<pallas_src>
import functools

import jax
import jax.numpy as jnp
from jax import lax
from jax.experimental import pallas as pl
from jax.experimental.pallas import tpu as pltpu

EPS = 1e-5  # PyTorch GroupNorm default eps


def _silu(v):
    return v * jax.nn.sigmoid(v)


def _shift_lanes(a2, sp):
    """Circular shift along lanes: out[:, m] = a2[:, (m + sp) % M] (static sp)."""
    if sp == 0:
        return a2
    return jnp.concatenate([a2[:, sp:], a2[:, :sp]], axis=1)


def up_block_kernel(x_ref, skip_ref, kupT_ref, gnw_ref, gnb_ref, w1t_ref,
                    tp_ref, w2sc_ref, scb_ref, mask_ref, o_ref,
                    *, shifts, mxu_dtype):
    B, Cx, HW = x_ref.shape
    _, Cs, M = skip_ref.shape
    Cin = Cs + Cx
    Cout = o_ref.shape[1]

    # ---- 1. bilinear upsample (align_corners=True): one batched MXU matmul ----
    xu = jnp.dot(x_ref[...].reshape(B * Cx, HW), kupT_ref[...],
                 preferred_element_type=jnp.float32).reshape(B, Cx, M)

    # ---- 2. channel concat [skip, up(x)] in channel-major layout --------------
    craw = jnp.concatenate([skip_ref[...], xu], axis=1)           # (B, Cin, M) f32

    # ---- 3. GroupNorm(1, Cin) per sample (shifted two-pass, f32) + silu -------
    cnt = float(Cin * M)
    mean = jnp.sum(jnp.sum(craw, axis=2, keepdims=True), axis=1,
                   keepdims=True) / cnt                            # (B, 1, 1)
    d = craw - mean
    var = jnp.sum(jnp.sum(d * d, axis=2, keepdims=True), axis=1,
                  keepdims=True) / cnt
    rstd = lax.rsqrt(var + EPS)
    a = _silu(d * rstd * gnw_ref[...].reshape(1, Cin, 1)
              + gnb_ref[...].reshape(1, Cin, 1))                   # (B, Cin, M)

    masks = mask_ref[...]                                          # (9, M) {0,1}

    def taps_of(act):
        # 9 shifted + boundary-masked copies of `act`, stacked along channels.
        Bc, C, _ = act.shape
        a2 = act.reshape(Bc * C, M)
        pieces = []
        for k, sp in enumerate(shifts):
            mk = masks[k:k + 1].reshape(1, 1, M)
            pieces.append(_shift_lanes(a2, sp).reshape(Bc, C, M) * mk)
        return jnp.concatenate(pieces, axis=1)                     # (B, 9*C, M)

    # ---- 4. conv1 (3x3 SAME) as ONE fused matmul, K = 9*Cin -------------------
    col1 = taps_of(a).astype(mxu_dtype)
    w1t = jnp.broadcast_to(w1t_ref[...], (B,) + tuple(w1t_ref.shape))
    h1 = jnp.einsum('bok,bkm->bom', w1t, col1,
                    preferred_element_type=jnp.float32)            # (B, Cout, M)

    # ---- 5. + silu(Linear(t)) (hoisted to wrapper), then silu -----------------
    h1 = _silu(h1 + tp_ref[...])                                   # (B,Cout,1) bcast

    # ---- 6. conv2 (3x3) + 1x1 shortcut on raw concat: ONE fused matmul --------
    col2 = jnp.concatenate([taps_of(h1), craw], axis=1).astype(mxu_dtype)
    w2sc = jnp.broadcast_to(w2sc_ref[...], (B,) + tuple(w2sc_ref.shape))
    h2 = jnp.einsum('bok,bkm->bom', w2sc, col2,
                    preferred_element_type=jnp.float32)            # (B, Cout, M)

    # ---- 7. + shortcut bias; lane-dense (M = H2*W2) store, no channel padding -
    o_ref[...] = (h2 + scb_ref[...].reshape(1, Cout, 1)).astype(o_ref.dtype)


def _interp_matrix(n_in, n_out):
    """1-D linear interpolation operator for Upsample(align_corners=True)."""
    if n_in == 1:
        return jnp.ones((n_out, 1), jnp.float32)
    src = jnp.arange(n_out, dtype=jnp.float32) * (n_in - 1) / (n_out - 1)
    i0 = jnp.clip(jnp.floor(src).astype(jnp.int32), 0, n_in - 2)
    frac = src - i0.astype(jnp.float32)
    rows = jnp.arange(n_out)
    a = jnp.zeros((n_out, n_in), jnp.float32)
    a = a.at[rows, i0].add(1.0 - frac)
    a = a.at[rows, i0 + 1].add(frac)
    return a


def up_forward(x_nchw, skip_nchw, t, params, *, batch_tile=None,
               mxu_dtype=jnp.bfloat16):
    """Up.forward: x (N,Cx,H,W), skip (N,Cs,2H,2W), t (N,E) -> (N,Cout,2H,2W)."""
    gn_w, gn_b, w1, pw, pb, w2, sc_w, sc_b = params
    N, Cx, H, W = x_nchw.shape
    _, Cs, H2, W2 = skip_nchw.shape
    assert H2 == 2 * H and W2 == 2 * W
    Cin = Cs + Cx
    Cout = w1.shape[-1]
    HW = H * W
    M = H2 * W2

    bt = 1 if batch_tile is None else batch_tile   # >=2 grid steps -> pipelining
    assert N % bt == 0

    # Channel-major (== NCHW) flattened spatial; these reshapes are free.
    x_flat = x_nchw.reshape(N, Cx, HW).astype(jnp.float32)
    skip_flat = skip_nchw.reshape(N, Cs, M).astype(jnp.float32)

    # Hoisted time-embedding projection: one (N,E)@(E,Cout) matmul for all N.
    tp = t @ pw + pb
    tp = (tp * jax.nn.sigmoid(tp)).reshape(N, Cout, 1).astype(jnp.float32)

    # Bilinear upsample operator (kept f32 for parity with the reference).
    # TODO(synk): switch to separable (H2,H)/(W2,W) operators for large spatial.
    kupT = jnp.kron(_interp_matrix(H, H2),
                    _interp_matrix(W, W2)).T.astype(jnp.float32)   # (HW, M)

    # Conv weights, tap-major transposed: w_t[o, k*C + c] = w[dy, dx, c, o].
    w1t = jnp.transpose(w1.reshape(9, Cin, Cout),
                        (2, 0, 1)).reshape(Cout, 9 * Cin).astype(mxu_dtype)
    w2t = jnp.transpose(w2.reshape(9, Cout, Cout),
                        (2, 0, 1)).reshape(Cout, 9 * Cout)
    if Cin != Cout:
        scw, scb = sc_w, sc_b
    else:
        # TODO(synk): PyTorch skips the 1x1 shortcut when Cin == Cout; identity
        # weights reproduce it (never occurs for Up, where concat doubles C).
        scw = jnp.eye(Cin, dtype=jnp.float32)
        scb = jnp.zeros((Cout,), jnp.float32)
    # conv2 and the 1x1 shortcut share one fused matmul: K = 9*Cout + Cin.
    w2sc = jnp.concatenate([w2t, scw.T], axis=1).astype(mxu_dtype)  # (Cout, 9*Cout+Cin)
    scb_c = scb.reshape(Cout, 1).astype(jnp.float32)

    gnw = gn_w.reshape(Cin, 1).astype(jnp.float32)
    gnb = gn_b.reshape(Cin, 1).astype(jnp.float32)

    # 3x3 SAME-conv tap lane-shifts (static) + boundary masks (precomputed).
    yy = jnp.arange(M, dtype=jnp.int32) // W2
    xx = jnp.arange(M, dtype=jnp.int32) % W2
    shifts = []
    masks = []
    for k in range(9):
        dy, dx = k // 3, k % 3
        shifts.append(((dy - 1) * W2 + (dx - 1)) % M)
        ok = ((yy + dy - 1 >= 0) & (yy + dy - 1 < H2) &
              (xx + dx - 1 >= 0) & (xx + dx - 1 < W2))
        masks.append(ok.astype(jnp.float32))
    mask_arr = jnp.stack(masks, axis=0)                             # (9, M)

    kernel = functools.partial(up_block_kernel, shifts=tuple(shifts),
                               mxu_dtype=mxu_dtype)

    out = pl.pallas_call(
        kernel,
        out_shape=jax.ShapeDtypeStruct((N, Cout, M), jnp.float32),
        grid_spec=pltpu.PrefetchScalarGridSpec(
            num_scalar_prefetch=0,
            grid=(N // bt,),
            in_specs=[
                pl.BlockSpec((bt, Cx, HW), lambda i: (i, 0, 0)),     # x (C-major)
                pl.BlockSpec((bt, Cs, M), lambda i: (i, 0, 0)),      # skip (C-major)
                pl.BlockSpec((HW, M), lambda i: (0, 0)),             # upsample op
                pl.BlockSpec((Cin, 1), lambda i: (0, 0)),            # gn weight
                pl.BlockSpec((Cin, 1), lambda i: (0, 0)),            # gn bias
                pl.BlockSpec((Cout, 9 * Cin), lambda i: (0, 0)),     # conv1 weight
                pl.BlockSpec((bt, Cout, 1), lambda i: (i, 0, 0)),    # silu(proj(t))
                pl.BlockSpec((Cout, 9 * Cout + Cin), lambda i: (0, 0)),  # conv2+shortcut
                pl.BlockSpec((Cout, 1), lambda i: (0, 0)),           # shortcut bias
                pl.BlockSpec((9, M), lambda i: (0, 0)),              # tap masks
            ],
            out_specs=pl.BlockSpec((bt, Cout, M), lambda i: (i, 0, 0)),
        ),
        compiler_params=pltpu.CompilerParams(
            # grid steps are fully independent -> shard across v7x TensorCores
            dimension_semantics=("parallel",),
        ),
    )(x_flat, skip_flat, kupT, gnw, gnb, w1t, tp, w2sc, scb_c, mask_arr)

    # Already channel-major: free reshape to NCHW, no transpose, no slice.
    return out.reshape(N, Cout, H2, W2)


def up_forward_ref(x_nchw, skip_nchw, t, params):
    """Pure-JAX reference mirroring the PyTorch Up.forward."""
    gn_w, gn_b, w1, pw, pb, w2, sc_w, sc_b = params
    N, Cx, H, W = x_nchw.shape
    _, Cs, H2, W2 = skip_nchw.shape
    Cin = Cs + Cx
    Cout = w1.shape[-1]
    ah = _interp_matrix(H, H2)
    aw = _interp_matrix(W, W2)
    xu = jnp.einsum('Ih,Jw,nchw->ncIJ', ah, aw, x_nchw)     # bilinear, align_corners
    xcat = jnp.concatenate([skip_nchw, xu], axis=1)         # cat([skip, x], dim=1)
    x = jnp.transpose(xcat, (0, 2, 3, 1))                   # NHWC
    mean = x.mean(axis=(1, 2, 3), keepdims=True)            # GroupNorm(1, Cin)
    var = ((x - mean) ** 2).mean(axis=(1, 2, 3), keepdims=True)
    h = (x - mean) / jnp.sqrt(var + EPS) * gn_w + gn_b
    h = h * jax.nn.sigmoid(h)
    dn = ('NHWC', 'HWIO', 'NHWC')
    h = lax.conv_general_dilated(h, w1, (1, 1), 'SAME', dimension_numbers=dn)
    tpv = t @ pw + pb
    tpv = tpv * jax.nn.sigmoid(tpv)
    h = h + tpv[:, None, None, :]
    h = h * jax.nn.sigmoid(h)
    h = lax.conv_general_dilated(h, w2, (1, 1), 'SAME', dimension_numbers=dn)
    if Cin != Cout:
        xs = jnp.einsum('nhwc,co->nhwo', x, sc_w) + sc_b    # 1x1 shortcut conv
    else:
        xs = x
    return jnp.transpose(xs + h, (0, 3, 1, 2))


if __name__ == "__main__":
    # Up(in_channels=8, out_channels=16): x (N,4,8,8) is upsampled to 16x16,
    # concatenated with skip (N,4,16,16) -> Block(8, 16) -> (N,16,16,16).
    N, Cx, Cs, Cout, H, W, E = 2, 4, 4, 16, 8, 8, 256
    Cin = Cx + Cs
    key = jax.random.PRNGKey(0)
    ks = jax.random.split(key, 12)

    gn_w = 1.0 + 0.1 * jax.random.normal(ks[0], (Cin,), jnp.float32)
    gn_b = 0.1 * jax.random.normal(ks[1], (Cin,), jnp.float32)
    w1 = 0.2 * jax.random.normal(ks[2], (3, 3, Cin, Cout), jnp.float32)   # conv1 HWIO
    pw = 0.05 * jax.random.normal(ks[3], (E, Cout), jnp.float32)          # Linear W^T
    pb = 0.1 * jax.random.normal(ks[4], (Cout,), jnp.float32)
    w2 = 0.2 * jax.random.normal(ks[5], (3, 3, Cout, Cout), jnp.float32)  # conv2 HWIO
    sc_w = 0.2 * jax.random.normal(ks[6], (Cin, Cout), jnp.float32)       # 1x1 shortcut
    sc_b = 0.1 * jax.random.normal(ks[7], (Cout,), jnp.float32)
    params = (gn_w, gn_b, w1, pw, pb, w2, sc_w, sc_b)

    x = jax.random.normal(ks[8], (N, Cx, H, W), jnp.float32)              # NCHW
    skip = jax.random.normal(ks[9], (N, Cs, 2 * H, 2 * W), jnp.float32)
    t = jax.random.normal(ks[10], (N, E), jnp.float32)

    ref = jax.block_until_ready(up_forward_ref(x, skip, t, params))

    # Strict check with f32 MXU operands.
    out_f32 = jax.block_until_ready(
        up_forward(x, skip, t, params, mxu_dtype=jnp.float32))
    assert out_f32.shape == (N, Cout, 2 * H, 2 * W), out_f32.shape
    if not jnp.allclose(out_f32, ref, atol=5e-3, rtol=5e-3):
        raise AssertionError(
            f"f32 mismatch, max abs err {jnp.max(jnp.abs(out_f32 - ref))}")

    # Default path: bf16 MXU operands (f32 accumulation / elementwise).
    out_bf16 = jax.block_until_ready(up_forward(x, skip, t, params))
    if not jnp.allclose(out_bf16, ref, atol=1e-1, rtol=1e-1):
        raise AssertionError(
            f"bf16 mismatch, max abs err {jnp.max(jnp.abs(out_bf16 - ref))}")

    print("KERNEL_OK")
</pallas_src>

<mosaic_0001>
module attributes {stable_mosaic.version = 11 : i64} {
  func.func @up_block_kernel(%arg0: i32, %arg1: memref<1x4x64xf32, #tpu.memory_space<vmem>>, %arg2: memref<1x4x256xf32, #tpu.memory_space<vmem>>, %arg3: memref<64x256xf32, #tpu.memory_space<vmem>>, %arg4: memref<8x1xf32, #tpu.memory_space<vmem>>, %arg5: memref<8x1xf32, #tpu.memory_space<vmem>>, %arg6: memref<16x72xf32, #tpu.memory_space<vmem>>, %arg7: memref<1x16x1xf32, #tpu.memory_space<vmem>>, %arg8: memref<16x152xf32, #tpu.memory_space<vmem>>, %arg9: memref<16x1xf32, #tpu.memory_space<vmem>>, %arg10: memref<9x256xf32, #tpu.memory_space<vmem>>, %arg11: memref<1x16x256xf32, #tpu.memory_space<vmem>>) attributes {dimension_semantics = [#tpu.dimension_semantics<parallel>], iteration_bounds = array<i64: 2>, scalar_prefetch = 0 : i64, scratch_operands = 0 : i64, tpu.core_type = #tpu.core_type<tc>, window_params = [{transform_indices = @transform_0, window_bounds = array<i64: 1, 4, 64>}, {transform_indices = @transform_1, window_bounds = array<i64: 1, 4, 256>}, {pipeline_mode = #tpu.pipeline_mode<synchronous>, transform_indices = @transform_2, window_bounds = array<i64: 64, 256>}, {pipeline_mode = #tpu.pipeline_mode<synchronous>, transform_indices = @transform_3, window_bounds = array<i64: 8, 1>}, {pipeline_mode = #tpu.pipeline_mode<synchronous>, transform_indices = @transform_4, window_bounds = array<i64: 8, 1>}, {pipeline_mode = #tpu.pipeline_mode<synchronous>, transform_indices = @transform_5, window_bounds = array<i64: 16, 72>}, {transform_indices = @transform_6, window_bounds = array<i64: 1, 16, 1>}, {pipeline_mode = #tpu.pipeline_mode<synchronous>, transform_indices = @transform_7, window_bounds = array<i64: 16, 152>}, {pipeline_mode = #tpu.pipeline_mode<synchronous>, transform_indices = @transform_8, window_bounds = array<i64: 16, 1>}, {pipeline_mode = #tpu.pipeline_mode<synchronous>, transform_indices = @transform_9, window_bounds = array<i64: 9, 256>}, {transform_indices = @transform_10, window_bounds = array<i64: 1, 16, 256>}]} {
    %c0 = arith.constant 0 : index
    %c0_0 = arith.constant 0 : index
    %c0_1 = arith.constant 0 : index
    %0 = vector.load %arg1[%c0, %c0_0, %c0_1] : memref<1x4x64xf32, #tpu.memory_space<vmem>>, vector<1x4x64xf32>
    %1 = vector.shape_cast %0 : vector<1x4x64xf32> to vector<4x64xf32>
    %c0_2 = arith.constant 0 : index
    %c0_3 = arith.constant 0 : index
    %2 = vector.load %arg3[%c0_2, %c0_3] : memref<64x256xf32, #tpu.memory_space<vmem>>, vector<64x256xf32>
    %cst = arith.constant dense<0.000000e+00> : vector<4x256xf32>
    %3 = tpu.matmul %1, %2, %cst {dimension_numbers = #tpu.dot_dimension_numbers<[1], [0], [0], [1], [0, 0, 1, 1], [], []>} : vector<4x64xf32>, vector<64x256xf32>, vector<4x256xf32> -> vector<4x256xf32>
    %4 = vector.shape_cast %3 : vector<4x256xf32> to vector<1x4x256xf32>
    %c0_4 = arith.constant 0 : index
    %c0_5 = arith.constant 0 : index
    %c0_6 = arith.constant 0 : index
    %5 = vector.load %arg2[%c0_4, %c0_5, %c0_6] : memref<1x4x256xf32, #tpu.memory_space<vmem>>, vector<1x4x256xf32>
    %6 = tpu.concatenate %5, %4 in 1 : vector<1x4x256xf32>, vector<1x4x256xf32> -> vector<1x8x256xf32>
    %cst_7 = arith.constant dense<0.000000e+00> : vector<1x8xf32>
    %7 = vector.multi_reduction <add>, %6, %cst_7 [2] : vector<1x8x256xf32> to vector<1x8xf32>
    %8 = vector.shape_cast %7 : vector<1x8xf32> to vector<1x8x1xf32>
    %cst_8 = arith.constant dense<0.000000e+00> : vector<1x1xf32>
    %9 = vector.multi_reduction <add>, %8, %cst_8 [1] : vector<1x8x1xf32> to vector<1x1xf32>
    %10 = vector.shape_cast %9 : vector<1x1xf32> to vector<1x1x1xf32>
    %cst_9 = arith.constant 2.048000e+03 : f32
    %11 = vector.broadcast %cst_9 : f32 to vector<1x1x1xf32>
    %12 = arith.divf %10, %11 : vector<1x1x1xf32>
    %13 = vector.broadcast %12 : vector<1x1x1xf32> to vector<1x8x256xf32>
    %14 = arith.subf %6, %13 : vector<1x8x256xf32>
    %15 = arith.mulf %14, %14 : vector<1x8x256xf32>
    %cst_10 = arith.constant dense<0.000000e+00> : vector<1x8xf32>
    %16 = vector.multi_reduction <add>, %15, %cst_10 [2] : vector<1x8x256xf32> to vector<1x8xf32>
    %17 = vector.shape_cast %16 : vector<1x8xf32> to vector<1x8x1xf32>
    %cst_11 = arith.constant dense<0.000000e+00> : vector<1x1xf32>
    %18 = vector.multi_reduction <add>, %17, %cst_11 [1] : vector<1x8x1xf32> to vector<1x1xf32>
    %19 = vector.shape_cast %18 : vector<1x1xf32> to vector<1x1x1xf32>
    %cst_12 = arith.constant 2.048000e+03 : f32
    %20 = vector.broadcast %cst_12 : f32 to vector<1x1x1xf32>
    %21 = arith.divf %19, %20 : vector<1x1x1xf32>
    %cst_13 = arith.constant 9.99999974E-6 : f32
    %22 = vector.broadcast %cst_13 : f32 to vector<1x1x1xf32>
    %23 = arith.addf %21, %22 : vector<1x1x1xf32>
    %24 = math.rsqrt %23 : vector<1x1x1xf32>
    %25 = vector.broadcast %24 : vector<1x1x1xf32> to vector<1x8x256xf32>
    %26 = arith.mulf %14, %25 : vector<1x8x256xf32>
    %c0_14 = arith.constant 0 : index
    %c0_15 = arith.constant 0 : index
    %27 = vector.load %arg4[%c0_14, %c0_15] : memref<8x1xf32, #tpu.memory_space<vmem>>, vector<8x1xf32>
    %28 = vector.shape_cast %27 : vector<8x1xf32> to vector<1x8x1xf32>
    %29 = vector.broadcast %28 : vector<1x8x1xf32> to vector<1x8x256xf32>
    %30 = arith.mulf %26, %29 : vector<1x8x256xf32>
    %c0_16 = arith.constant 0 : index
    %c0_17 = arith.constant 0 : index
    %31 = vector.load %arg5[%c0_16, %c0_17] : memref<8x1xf32, #tpu.memory_space<vmem>>, vector<8x1xf32>
    %32 = vector.shape_cast %31 : vector<8x1xf32> to vector<1x8x1xf32>
    %33 = vector.broadcast %32 : vector<1x8x1xf32> to vector<1x8x256xf32>
    %34 = arith.addf %30, %33 : vector<1x8x256xf32>
    %35 = arith.negf %34 : vector<1x8x256xf32>
    %36 = math.exp %35 : vector<1x8x256xf32>
    %cst_18 = arith.constant 1.000000e+00 : f32
    %37 = vector.broadcast %cst_18 : f32 to vector<1x8x256xf32>
    %38 = arith.addf %37, %36 : vector<1x8x256xf32>
    %39 = arith.divf %37, %38 : vector<1x8x256xf32>
    %40 = arith.mulf %34, %39 : vector<1x8x256xf32>
    %c0_19 = arith.constant 0 : index
    %c0_20 = arith.constant 0 : index
    %41 = vector.load %arg10[%c0_19, %c0_20] : memref<9x256xf32, #tpu.memory_space<vmem>>, vector<9x256xf32>
    %42 = vector.shape_cast %40 : vector<1x8x256xf32> to vector<8x256xf32>
    %43 = vector.extract_strided_slice %41 {offsets = [0, 0], sizes = [1, 256], strides = [1, 1]} : vector<9x256xf32> to vector<1x256xf32>
    %44 = vector.shape_cast %43 : vector<1x256xf32> to vector<1x1x256xf32>
    %45 = vector.extract_strided_slice %42 {offsets = [0, 239], sizes = [8, 17], strides = [1, 1]} : vector<8x256xf32> to vector<8x17xf32>
    %46 = vector.extract_strided_slice %42 {offsets = [0, 0], sizes = [8, 239], strides = [1, 1]} : vector<8x256xf32> to vector<8x239xf32>
    %47 = tpu.concatenate %45, %46 in 1 : vector<8x17xf32>, vector<8x239xf32> -> vector<8x256xf32>
    %48 = vector.shape_cast %47 : vector<8x256xf32> to vector<1x8x256xf32>
    %49 = vector.broadcast %44 : vector<1x1x256xf32> to vector<1x8x256xf32>
    %50 = arith.mulf %48, %49 : vector<1x8x256xf32>
    %51 = vector.extract_strided_slice %41 {offsets = [1, 0], sizes = [1, 256], strides = [1, 1]} : vector<9x256xf32> to vector<1x256xf32>
    %52 = vector.shape_cast %51 : vector<1x256xf32> to vector<1x1x256xf32>
    %53 = vector.extract_strided_slice %42 {offsets = [0, 240], sizes = [8, 16], strides = [1, 1]} : vector<8x256xf32> to vector<8x16xf32>
    %54 = vector.extract_strided_slice %42 {offsets = [0, 0], sizes = [8, 240], strides = [1, 1]} : vector<8x256xf32> to vector<8x240xf32>
    %55 = tpu.concatenate %53, %54 in 1 : vector<8x16xf32>, vector<8x240xf32> -> vector<8x256xf32>
    %56 = vector.shape_cast %55 : vector<8x256xf32> to vector<1x8x256xf32>
    %57 = vector.broadcast %52 : vector<1x1x256xf32> to vector<1x8x256xf32>
    %58 = arith.mulf %56, %57 : vector<1x8x256xf32>
    %59 = vector.extract_strided_slice %41 {offsets = [2, 0], sizes = [1, 256], strides = [1, 1]} : vector<9x256xf32> to vector<1x256xf32>
    %60 = vector.shape_cast %59 : vector<1x256xf32> to vector<1x1x256xf32>
    %61 = vector.extract_strided_slice %42 {offsets = [0, 241], sizes = [8, 15], strides = [1, 1]} : vector<8x256xf32> to vector<8x15xf32>
    %62 = vector.extract_strided_slice %42 {offsets = [0, 0], sizes = [8, 241], strides = [1, 1]} : vector<8x256xf32> to vector<8x241xf32>
    %63 = tpu.concatenate %61, %62 in 1 : vector<8x15xf32>, vector<8x241xf32> -> vector<8x256xf32>
    %64 = vector.shape_cast %63 : vector<8x256xf32> to vector<1x8x256xf32>
    %65 = vector.broadcast %60 : vector<1x1x256xf32> to vector<1x8x256xf32>
    %66 = arith.mulf %64, %65 : vector<1x8x256xf32>
    %67 = vector.extract_strided_slice %41 {offsets = [3, 0], sizes = [1, 256], strides = [1, 1]} : vector<9x256xf32> to vector<1x256xf32>
    %68 = vector.shape_cast %67 : vector<1x256xf32> to vector<1x1x256xf32>
    %69 = vector.extract_strided_slice %42 {offsets = [0, 255], sizes = [8, 1], strides = [1, 1]} : vector<8x256xf32> to vector<8x1xf32>
    %70 = vector.extract_strided_slice %42 {offsets = [0, 0], sizes = [8, 255], strides = [1, 1]} : vector<8x256xf32> to vector<8x255xf32>
    %71 = tpu.concatenate %69, %70 in 1 : vector<8x1xf32>, vector<8x255xf32> -> vector<8x256xf32>
    %72 = vector.shape_cast %71 : vector<8x256xf32> to vector<1x8x256xf32>
    %73 = vector.broadcast %68 : vector<1x1x256xf32> to vector<1x8x256xf32>
    %74 = arith.mulf %72, %73 : vector<1x8x256xf32>
    %75 = vector.extract_strided_slice %41 {offsets = [4, 0], sizes = [1, 256], strides = [1, 1]} : vector<9x256xf32> to vector<1x256xf32>
    %76 = vector.shape_cast %75 : vector<1x256xf32> to vector<1x1x256xf32>
    %77 = vector.shape_cast %42 : vector<8x256xf32> to vector<1x8x256xf32>
    %78 = vector.broadcast %76 : vector<1x1x256xf32> to vector<1x8x256xf32>
    %79 = arith.mulf %77, %78 : vector<1x8x256xf32>
    %80 = vector.extract_strided_slice %41 {offsets = [5, 0], sizes = [1, 256], strides = [1, 1]} : vector<9x256xf32> to vector<1x256xf32>
    %81 = vector.shape_cast %80 : vector<1x256xf32> to vector<1x1x256xf32>
    %82 = vector.extract_strided_slice %42 {offsets = [0, 1], sizes = [8, 255], strides = [1, 1]} : vector<8x256xf32> to vector<8x255xf32>
    %83 = vector.extract_strided_slice %42 {offsets = [0, 0], sizes = [8, 1], strides = [1, 1]} : vector<8x256xf32> to vector<8x1xf32>
    %84 = tpu.concatenate %82, %83 in 1 : vector<8x255xf32>, vector<8x1xf32> -> vector<8x256xf32>
    %85 = vector.shape_cast %84 : vector<8x256xf32> to vector<1x8x256xf32>
    %86 = vector.broadcast %81 : vector<1x1x256xf32> to vector<1x8x256xf32>
    %87 = arith.mulf %85, %86 : vector<1x8x256xf32>
    %88 = vector.extract_strided_slice %41 {offsets = [6, 0], sizes = [1, 256], strides = [1, 1]} : vector<9x256xf32> to vector<1x256xf32>
    %89 = vector.shape_cast %88 : vector<1x256xf32> to vector<1x1x256xf32>
    %90 = vector.extract_strided_slice %42 {offsets = [0, 15], sizes = [8, 241], strides = [1, 1]} : vector<8x256xf32> to vector<8x241xf32>
    %91 = vector.extract_strided_slice %42 {offsets = [0, 0], sizes = [8, 15], strides = [1, 1]} : vector<8x256xf32> to vector<8x15xf32>
    %92 = tpu.concatenate %90, %91 in 1 : vector<8x241xf32>, vector<8x15xf32> -> vector<8x256xf32>
    %93 = vector.shape_cast %92 : vector<8x256xf32> to vector<1x8x256xf32>
    %94 = vector.broadcast %89 : vector<1x1x256xf32> to vector<1x8x256xf32>
    %95 = arith.mulf %93, %94 : vector<1x8x256xf32>
    %96 = vector.extract_strided_slice %41 {offsets = [7, 0], sizes = [1, 256], strides = [1, 1]} : vector<9x256xf32> to vector<1x256xf32>
    %97 = vector.shape_cast %96 : vector<1x256xf32> to vector<1x1x256xf32>
    %98 = vector.extract_strided_slice %42 {offsets = [0, 16], sizes = [8, 240], strides = [1, 1]} : vector<8x256xf32> to vector<8x240xf32>
    %99 = vector.extract_strided_slice %42 {offsets = [0, 0], sizes = [8, 16], strides = [1, 1]} : vector<8x256xf32> to vector<8x16xf32>
    %100 = tpu.concatenate %98, %99 in 1 : vector<8x240xf32>, vector<8x16xf32> -> vector<8x256xf32>
    %101 = vector.shape_cast %100 : vector<8x256xf32> to vector<1x8x256xf32>
    %102 = vector.broadcast %97 : vector<1x1x256xf32> to vector<1x8x256xf32>
    %103 = arith.mulf %101, %102 : vector<1x8x256xf32>
    %104 = vector.extract_strided_slice %41 {offsets = [8, 0], sizes = [1, 256], strides = [1, 1]} : vector<9x256xf32> to vector<1x256xf32>
    %105 = vector.shape_cast %104 : vector<1x256xf32> to vector<1x1x256xf32>
    %106 = vector.extract_strided_slice %42 {offsets = [0, 17], sizes = [8, 239], strides = [1, 1]} : vector<8x256xf32> to vector<8x239xf32>
    %107 = vector.extract_strided_slice %42 {offsets = [0, 0], sizes = [8, 17], strides = [1, 1]} : vector<8x256xf32> to vector<8x17xf32>
    %108 = tpu.concatenate %106, %107 in 1 : vector<8x239xf32>, vector<8x17xf32> -> vector<8x256xf32>
    %109 = vector.shape_cast %108 : vector<8x256xf32> to vector<1x8x256xf32>
    %110 = vector.broadcast %105 : vector<1x1x256xf32> to vector<1x8x256xf32>
    %111 = arith.mulf %109, %110 : vector<1x8x256xf32>
    %112 = tpu.concatenate %50, %58, %66, %74, %79, %87, %95, %103, %111 in 1 : vector<1x8x256xf32>, vector<1x8x256xf32>, vector<1x8x256xf32>, vector<1x8x256xf32>, vector<1x8x256xf32>, vector<1x8x256xf32>, vector<1x8x256xf32>, vector<1x8x256xf32>, vector<1x8x256xf32> -> vector<1x72x256xf32>
    %c0_21 = arith.constant 0 : index
    %c0_22 = arith.constant 0 : index
    %113 = vector.load %arg6[%c0_21, %c0_22] : memref<16x72xf32, #tpu.memory_space<vmem>>, vector<16x72xf32>
    %114 = vector.shape_cast %113 : vector<16x72xf32> to vector<1x16x72xf32>
    "tpu.trace_start"() <{level = 10 : i32, message = "bok,bkm->bom"}> : () -> ()
    %cst_23 = arith.constant dense<0.000000e+00> : vector<1x16x256xf32>
    %115 = tpu.matmul %114, %112, %cst_23 {dimension_numbers = #tpu.dot_dimension_numbers<[2], [1], [1], [2], [0, 0, 0, 1, 1, 2], [0], [0]>} : vector<1x16x72xf32>, vector<1x72x256xf32>, vector<1x16x256xf32> -> vector<1x16x256xf32>
    "tpu.trace_stop"() : () -> ()
    %c0_24 = arith.constant 0 : index
    %c0_25 = arith.constant 0 : index
    %c0_26 = arith.constant 0 : index
    %116 = vector.load %arg7[%c0_24, %c0_25, %c0_26] : memref<1x16x1xf32, #tpu.memory_space<vmem>>, vector<1x16x1xf32>
    %117 = vector.broadcast %116 : vector<1x16x1xf32> to vector<1x16x256xf32>
    %118 = arith.addf %115, %117 : vector<1x16x256xf32>
    %119 = arith.negf %118 : vector<1x16x256xf32>
    %120 = math.exp %119 : vector<1x16x256xf32>
    %cst_27 = arith.constant 1.000000e+00 : f32
    %121 = vector.broadcast %cst_27 : f32 to vector<1x16x256xf32>
    %122 = arith.addf %121, %120 : vector<1x16x256xf32>
    %123 = arith.divf %121, %122 : vector<1x16x256xf32>
    %124 = arith.mulf %118, %123 : vector<1x16x256xf32>
    %125 = vector.shape_cast %124 : vector<1x16x256xf32> to vector<16x256xf32>
    %126 = vector.extract_strided_slice %41 {offsets = [0, 0], sizes = [1, 256], strides = [1, 1]} : vector<9x256xf32> to vector<1x256xf32>
    %127 = vector.shape_cast %126 : vector<1x256xf32> to vector<1x1x256xf32>
    %128 = vector.extract_strided_slice %125 {offsets = [0, 239], sizes = [16, 17], strides = [1, 1]} : vector<16x256xf32> to vector<16x17xf32>
    %129 = vector.extract_strided_slice %125 {offsets = [0, 0], sizes = [16, 239], strides = [1, 1]} : vector<16x256xf32> to vector<16x239xf32>
    %130 = tpu.concatenate %128, %129 in 1 : vector<16x17xf32>, vector<16x239xf32> -> vector<16x256xf32>
    %131 = vector.shape_cast %130 : vector<16x256xf32> to vector<1x16x256xf32>
    %132 = vector.broadcast %127 : vector<1x1x256xf32> to vector<1x16x256xf32>
    %133 = arith.mulf %131, %132 : vector<1x16x256xf32>
    %134 = vector.extract_strided_slice %41 {offsets = [1, 0], sizes = [1, 256], strides = [1, 1]} : vector<9x256xf32> to vector<1x256xf32>
    %135 = vector.shape_cast %134 : vector<1x256xf32> to vector<1x1x256xf32>
    %136 = vector.extract_strided_slice %125 {offsets = [0, 240], sizes = [16, 16], strides = [1, 1]} : vector<16x256xf32> to vector<16x16xf32>
    %137 = vector.extract_strided_slice %125 {offsets = [0, 0], sizes = [16, 240], strides = [1, 1]} : vector<16x256xf32> to vector<16x240xf32>
    %138 = tpu.concatenate %136, %137 in 1 : vector<16x16xf32>, vector<16x240xf32> -> vector<16x256xf32>
    %139 = vector.shape_cast %138 : vector<16x256xf32> to vector<1x16x256xf32>
    %140 = vector.broadcast %135 : vector<1x1x256xf32> to vector<1x16x256xf32>
    %141 = arith.mulf %139, %140 : vector<1x16x256xf32>
    %142 = vector.extract_strided_slice %41 {offsets = [2, 0], sizes = [1, 256], strides = [1, 1]} : vector<9x256xf32> to vector<1x256xf32>
    %143 = vector.shape_cast %142 : vector<1x256xf32> to vector<1x1x256xf32>
    %144 = vector.extract_strided_slice %125 {offsets = [0, 241], sizes = [16, 15], strides = [1, 1]} : vector<16x256xf32> to vector<16x15xf32>
    %145 = vector.extract_strided_slice %125 {offsets = [0, 0], sizes = [16, 241], strides = [1, 1]} : vector<16x256xf32> to vector<16x241xf32>
    %146 = tpu.concatenate %144, %145 in 1 : vector<16x15xf32>, vector<16x241xf32> -> vector<16x256xf32>
    %147 = vector.shape_cast %146 : vector<16x256xf32> to vector<1x16x256xf32>
    %148 = vector.broadcast %143 : vector<1x1x256xf32> to vector<1x16x256xf32>
    %149 = arith.mulf %147, %148 : vector<1x16x256xf32>
    %150 = vector.extract_strided_slice %41 {offsets = [3, 0], sizes = [1, 256], strides = [1, 1]} : vector<9x256xf32> to vector<1x256xf32>
    %151 = vector.shape_cast %150 : vector<1x256xf32> to vector<1x1x256xf32>
    %152 = vector.extract_strided_slice %125 {offsets = [0, 255], sizes = [16, 1], strides = [1, 1]} : vector<16x256xf32> to vector<16x1xf32>
    %153 = vector.extract_strided_slice %125 {offsets = [0, 0], sizes = [16, 255], strides = [1, 1]} : vector<16x256xf32> to vector<16x255xf32>
    %154 = tpu.concatenate %152, %153 in 1 : vector<16x1xf32>, vector<16x255xf32> -> vector<16x256xf32>
    %155 = vector.shape_cast %154 : vector<16x256xf32> to vector<1x16x256xf32>
    %156 = vector.broadcast %151 : vector<1x1x256xf32> to vector<1x16x256xf32>
    %157 = arith.mulf %155, %156 : vector<1x16x256xf32>
    %158 = vector.extract_strided_slice %41 {offsets = [4, 0], sizes = [1, 256], strides = [1, 1]} : vector<9x256xf32> to vector<1x256xf32>
    %159 = vector.shape_cast %158 : vector<1x256xf32> to vector<1x1x256xf32>
    %160 = vector.shape_cast %125 : vector<16x256xf32> to vector<1x16x256xf32>
    %161 = vector.broadcast %159 : vector<1x1x256xf32> to vector<1x16x256xf32>
    %162 = arith.mulf %160, %161 : vector<1x16x256xf32>
    %163 = vector.extract_strided_slice %41 {offsets = [5, 0], sizes = [1, 256], strides = [1, 1]} : vector<9x256xf32> to vector<1x256xf32>
    %164 = vector.shape_cast %163 : vector<1x256xf32> to vector<1x1x256xf32>
    %165 = vector.extract_strided_slice %125 {offsets = [0, 1], sizes = [16, 255], strides = [1, 1]} : vector<16x256xf32> to vector<16x255xf32>
    %166 = vector.extract_strided_slice %125 {offsets = [0, 0], sizes = [16, 1], strides = [1, 1]} : vector<16x256xf32> to vector<16x1xf32>
    %167 = tpu.concatenate %165, %166 in 1 : vector<16x255xf32>, vector<16x1xf32> -> vector<16x256xf32>
    %168 = vector.shape_cast %167 : vector<16x256xf32> to vector<1x16x256xf32>
    %169 = vector.broadcast %164 : vector<1x1x256xf32> to vector<1x16x256xf32>
    %170 = arith.mulf %168, %169 : vector<1x16x256xf32>
    %171 = vector.extract_strided_slice %41 {offsets = [6, 0], sizes = [1, 256], strides = [1, 1]} : vector<9x256xf32> to vector<1x256xf32>
    %172 = vector.shape_cast %171 : vector<1x256xf32> to vector<1x1x256xf32>
    %173 = vector.extract_strided_slice %125 {offsets = [0, 15], sizes = [16, 241], strides = [1, 1]} : vector<16x256xf32> to vector<16x241xf32>
    %174 = vector.extract_strided_slice %125 {offsets = [0, 0], sizes = [16, 15], strides = [1, 1]} : vector<16x256xf32> to vector<16x15xf32>
    %175 = tpu.concatenate %173, %174 in 1 : vector<16x241xf32>, vector<16x15xf32> -> vector<16x256xf32>
    %176 = vector.shape_cast %175 : vector<16x256xf32> to vector<1x16x256xf32>
    %177 = vector.broadcast %172 : vector<1x1x256xf32> to vector<1x16x256xf32>
    %178 = arith.mulf %176, %177 : vector<1x16x256xf32>
    %179 = vector.extract_strided_slice %41 {offsets = [7, 0], sizes = [1, 256], strides = [1, 1]} : vector<9x256xf32> to vector<1x256xf32>
    %180 = vector.shape_cast %179 : vector<1x256xf32> to vector<1x1x256xf32>
    %181 = vector.extract_strided_slice %125 {offsets = [0, 16], sizes = [16, 240], strides = [1, 1]} : vector<16x256xf32> to vector<16x240xf32>
    %182 = vector.extract_strided_slice %125 {offsets = [0, 0], sizes = [16, 16], strides = [1, 1]} : vector<16x256xf32> to vector<16x16xf32>
    %183 = tpu.concatenate %181, %182 in 1 : vector<16x240xf32>, vector<16x16xf32> -> vector<16x256xf32>
    %184 = vector.shape_cast %183 : vector<16x256xf32> to vector<1x16x256xf32>
    %185 = vector.broadcast %180 : vector<1x1x256xf32> to vector<1x16x256xf32>
    %186 = arith.mulf %184, %185 : vector<1x16x256xf32>
    %187 = vector.extract_strided_slice %41 {offsets = [8, 0], sizes = [1, 256], strides = [1, 1]} : vector<9x256xf32> to vector<1x256xf32>
    %188 = vector.shape_cast %187 : vector<1x256xf32> to vector<1x1x256xf32>
    %189 = vector.extract_strided_slice %125 {offsets = [0, 17], sizes = [16, 239], strides = [1, 1]} : vector<16x256xf32> to vector<16x239xf32>
    %190 = vector.extract_strided_slice %125 {offsets = [0, 0], sizes = [16, 17], strides = [1, 1]} : vector<16x256xf32> to vector<16x17xf32>
    %191 = tpu.concatenate %189, %190 in 1 : vector<16x239xf32>, vector<16x17xf32> -> vector<16x256xf32>
    %192 = vector.shape_cast %191 : vector<16x256xf32> to vector<1x16x256xf32>
    %193 = vector.broadcast %188 : vector<1x1x256xf32> to vector<1x16x256xf32>
    %194 = arith.mulf %192, %193 : vector<1x16x256xf32>
    %195 = tpu.concatenate %133, %141, %149, %157, %162, %170, %178, %186, %194 in 1 : vector<1x16x256xf32>, vector<1x16x256xf32>, vector<1x16x256xf32>, vector<1x16x256xf32>, vector<1x16x256xf32>, vector<1x16x256xf32>, vector<1x16x256xf32>, vector<1x16x256xf32>, vector<1x16x256xf32> -> vector<1x144x256xf32>
    %196 = tpu.concatenate %195, %6 in 1 : vector<1x144x256xf32>, vector<1x8x256xf32> -> vector<1x152x256xf32>
    %c0_28 = arith.constant 0 : index
    %c0_29 = arith.constant 0 : index
    %197 = vector.load %arg8[%c0_28, %c0_29] : memref<16x152xf32, #tpu.memory_space<vmem>>, vector<16x152xf32>
    %198 = vector.shape_cast %197 : vector<16x152xf32> to vector<1x16x152xf32>
    "tpu.trace_start"() <{level = 10 : i32, message = "bok,bkm->bom"}> : () -> ()
    %cst_30 = arith.constant dense<0.000000e+00> : vector<1x16x256xf32>
    %199 = tpu.matmul %198, %196, %cst_30 {dimension_numbers = #tpu.dot_dimension_numbers<[2], [1], [1], [2], [0, 0, 0, 1, 1, 2], [0], [0]>} : vector<1x16x152xf32>, vector<1x152x256xf32>, vector<1x16x256xf32> -> vector<1x16x256xf32>
    "tpu.trace_stop"() : () -> ()
    %c0_31 = arith.constant 0 : index
    %c0_32 = arith.constant 0 : index
    %200 = vector.load %arg9[%c0_31, %c0_32] : memref<16x1xf32, #tpu.memory_space<vmem>>, vector<16x1xf32>
    %201 = vector.shape_cast %200 : vector<16x1xf32> to vector<1x16x1xf32>
    %202 = vector.broadcast %201 : vector<1x16x1xf32> to vector<1x16x256xf32>
    %203 = arith.addf %199, %202 : vector<1x16x256xf32>
    %c0_33 = arith.constant 0 : index
    %c0_34 = arith.constant 0 : index
    %c0_35 = arith.constant 0 : index
    %204 = vector.load %arg11[%c0_33, %c0_34, %c0_35] : memref<1x16x256xf32, #tpu.memory_space<vmem>>, vector<1x16x256xf32>
    tpu.vector_store %arg11[%c0_33, %c0_34, %c0_35], %203 {strides = array<i32>} : memref<1x16x256xf32, #tpu.memory_space<vmem>>, vector<1x16x256xf32>,
    return
  }
  func.func @transform_0(%arg0: i32) -> (i32, i32, i32) {
    %c0_i32 = arith.constant 0 : i32
    %c0_i32_0 = arith.constant 0 : i32
    %c0_i32_1 = arith.constant 0 : i32
    return %arg0, %c0_i32, %c0_i32_0 : i32, i32, i32
  }
  func.func @transform_1(%arg0: i32) -> (i32, i32, i32) {
    %c0_i32 = arith.constant 0 : i32
    %c0_i32_0 = arith.constant 0 : i32
    %c0_i32_1 = arith.constant 0 : i32
    return %arg0, %c0_i32, %c0_i32_0 : i32, i32, i32
  }
  func.func @transform_2(%arg0: i32) -> (i32, i32) {
    %c0_i32 = arith.constant 0 : i32
    %c0_i32_0 = arith.constant 0 : i32
    %c0_i32_1 = arith.constant 0 : i32
    return %c0_i32, %c0_i32_0 : i32, i32
  }
  func.func @transform_3(%arg0: i32) -> (i32, i32) {
    %c0_i32 = arith.constant 0 : i32
    %c0_i32_0 = arith.constant 0 : i32
    %c0_i32_1 = arith.constant 0 : i32
    return %c0_i32, %c0_i32_0 : i32, i32
  }
  func.func @transform_4(%arg0: i32) -> (i32, i32) {
    %c0_i32 = arith.constant 0 : i32
    %c0_i32_0 = arith.constant 0 : i32
    %c0_i32_1 = arith.constant 0 : i32
    return %c0_i32, %c0_i32_0 : i32, i32
  }
  func.func @transform_5(%arg0: i32) -> (i32, i32) {
    %c0_i32 = arith.constant 0 : i32
    %c0_i32_0 = arith.constant 0 : i32
    %c0_i32_1 = arith.constant 0 : i32
    return %c0_i32, %c0_i32_0 : i32, i32
  }
  func.func @transform_6(%arg0: i32) -> (i32, i32, i32) {
    %c0_i32 = arith.constant 0 : i32
    %c0_i32_0 = arith.constant 0 : i32
    %c0_i32_1 = arith.constant 0 : i32
    return %arg0, %c0_i32, %c0_i32_0 : i32, i32, i32
  }
  func.func @transform_7(%arg0: i32) -> (i32, i32) {
    %c0_i32 = arith.constant 0 : i32
    %c0_i32_0 = arith.constant 0 : i32
    %c0_i32_1 = arith.constant 0 : i32
    return %c0_i32, %c0_i32_0 : i32, i32
  }
  func.func @transform_8(%arg0: i32) -> (i32, i32) {
    %c0_i32 = arith.constant 0 : i32
    %c0_i32_0 = arith.constant 0 : i32
    %c0_i32_1 = arith.constant 0 : i32
    return %c0_i32, %c0_i32_0 : i32, i32
  }
  func.func @transform_9(%arg0: i32) -> (i32, i32) {
    %c0_i32 = arith.constant 0 : i32
    %c0_i32_0 = arith.constant 0 : i32
    %c0_i32_1 = arith.constant 0 : i32
    return %c0_i32, %c0_i32_0 : i32, i32
  }
  func.func @transform_10(%arg0: i32) -> (i32, i32, i32) {
    %c0_i32 = arith.constant 0 : i32
    %c0_i32_0 = arith.constant 0 : i32
    %c0_i32_1 = arith.constant 0 : i32
    return %arg0, %c0_i32, %c0_i32_0 : i32, i32, i32
  }
}

</mosaic_0001>

<llo_original>
// kernel: tpu_custom_call.1
$region0: #{tpu_custom_call.1}
  #allocation0 [shape = 'u32[]', space=smem, size = 0x4, offset = 0x4, fixed_abs, tag = 'smem constant byte address 0x4 - core index']
  #allocation1 [shape = 'u32[72,128]{1,0:T(1,128)}', space=vmem, size = 0x9000, scoped, tag = 'internal scratch']
  %s0 = inlined_call_operand.hbm [shape: f32[2,4,64], index: 0, kind: input, shape index: {}]
  %s1 = inlined_call_operand.vmem [shape: f32[2,4,256], index: 1, kind: input, shape index: {}]
  %s2 = inlined_call_operand.hbm [shape: f32[64,256], index: 2, kind: input, shape index: {}]
  %s3 = inlined_call_operand.vmem [shape: f32[8,1], index: 3, kind: input, shape index: {}]
  %s4 = inlined_call_operand.vmem [shape: f32[8,1], index: 4, kind: input, shape index: {}]
  %s5 = inlined_call_operand.vmem [shape: f32[16,72], index: 5, kind: input, shape index: {}]
  %s6 = inlined_call_operand.vmem [shape: f32[2,16,1], index: 6, kind: input, shape index: {}]
  %s7 = inlined_call_operand.vmem [shape: f32[16,152], index: 7, kind: input, shape index: {}]
  %s8 = inlined_call_operand.vmem [shape: f32[16,1], index: 8, kind: input, shape index: {}]
  %s9 = inlined_call_operand.hbm [shape: f32[9,256], index: 9, kind: input, shape index: {}]
  %s10 = inlined_call_operand.hbm [shape: f32[2,16,256], index: 10, kind: output, shape index: {}]
  %s11 = sld [smem:[#allocation0]]
  $region85: #{tpu_custom_call.1} parent=0
    _
  %s13 = ssub.s32 1, %s11
  %s14 = scalar_select 0, %s13, %s11
  $region1: #{tpu_custom_call.1} parent=0
    #allocation2 [shape = 'u8[4096]{0}', space=vmem, size = 0x1000, scoped, tag = 'input window, operand 0']
    #allocation3 [shape = 's32[2]{0}', space=sflag, size = 0x8, scoped, tag = 'scoped memory for tpu_custom_call.1']
    #allocation4 [shape = 's32[2]{0}', space=sflag, size = 0x8, scoped, tag = 'scoped memory for tpu_custom_call.1']
    #allocation5 [shape = 'u8[65536]{0}', space=vmem, size = 0x10000, scoped, tag = 'input window, operand 2, single buffered']
    #allocation6 [shape = 's32[1]{0}', space=sflag, size = 0x4, scoped, tag = 'scoped memory for tpu_custom_call.1']
    #allocation7 [shape = 'u8[16384]{0}', space=vmem, size = 0x4000, scoped, tag = 'input window, operand 9, single buffered']
    #allocation8 [shape = 'u8[32768]{0}', space=vmem, size = 0x8000, scoped, tag = 'output window, operand 0']
    %15 = vsyncpa [#allocation3], 0
    %s16 = scalar_lea.sflag [#allocation3], 1
    %17 = vsyncpa %s16, 0
    %18 = vsyncpa [#allocation6], 0
    %19 = vsyncpa [#allocation4], 0
    %s20 = scalar_lea.sflag [#allocation4], 1
    %21 = vsyncpa %s20, 0
    loop: start=0, step=1, limit=4
    $region2: #{tpu_custom_call.1} parent=1 // loop_pre_header
      _
    $region3: #{tpu_custom_call.1} parent=1 // loop_header
      %s23 = sphi 0, %s27
      %p24 = scmp.ge.s32.totalorder %s23, 4
      %s33 = sphi 0, %s35
      %s36 = sphi 0, %s33
      %s37 = sphi 0, %s36
      %s53 = sphi 0, %s37
      %s59 = sphi 0, %s61
      %s62 = sphi 0, %s59
      %s63 = sphi 0, %s62
      %s79 = sphi 0, %s63
      %s83 = sphi 0, %s83
      %s85 = sphi 0, %s83
      %s86 = sphi 0, %s85
      %s100 = sphi 0, %s86
      %s104 = sphi 0, %s104
      %s106 = sphi 0, %s104
      %s107 = sphi 0, %s106
      %s121 = sphi 0, %s107
      %s125 = sphi 0, %s125
      %s127 = sphi 0, %s125
      %s128 = sphi 0, %s127
      %s142 = sphi 0, %s128
      %s146 = sphi 0, %s146
      %s148 = sphi 0, %s146
      %s149 = sphi 0, %s148
      %s163 = sphi 0, %s149
      %s169 = sphi 0, %s171
      %s172 = sphi 0, %s169
      %s173 = sphi 0, %s172
      %s189 = sphi 0, %s173
      %s193 = sphi 0, %s193
      %s195 = sphi 0, %s193
      %s196 = sphi 0, %s195
      %s210 = sphi 0, %s196
      %s214 = sphi 0, %s214
      %s216 = sphi 0, %s214
      %s217 = sphi 0, %s216
      %s231 = sphi 0, %s217
      %s235 = sphi 0, %s235
      %s237 = sphi 0, %s235
      %s238 = sphi 0, %s237
      %s252 = sphi 0, %s238
      %s258 = sphi 0, %s260
      %s261 = sphi 0, %s258
      %s262 = sphi 0, %s261
      %s278 = sphi 0, %s262
    $region4: #{tpu_custom_call.1} parent=1 // loop_header_branch
      %26 = sbr.rel (%p24) target = $region8
    $region5: #{tpu_custom_call.1} parent=1 // loop_body
      %s28 = ssub.s32 %s23, 1
      %s29 = ssub.s32 %s23, 2
      %s30 = sadd.s32 %s23, 1
      %s31 = ssub.s32 %s23, %s30
      %p32 = scmp.eq.s32.totalorder %s31, 0
      %s34 = sadd.s32 %s33, 1
      %s35 = scalar_select %p32, %s33, %s34
      %p38 = pneg %p32
      %p39 = scmp.eq.s32.totalorder %s23, 1
      %p40 = por %p38, %p39
      %p41 = scmp.ne.s32.totalorder %s33, %s36
      %p42 = scmp.eq.s32.totalorder %s23, 0
      %p43 = por %p41, %p42
      %p44 = scmp.ne.s32.totalorder %s33, %s36
      %p45 = scmp.eq.s32.totalorder %s28, 1
      %p46 = por %p44, %p45
      %p47 = scmp.ne.s32.totalorder %s36, %s37
      %p48 = scmp.eq.s32.totalorder %s28, 0
      %p49 = por %p47, %p48
      %p50 = scmp.ne.s32.totalorder %s36, %s37
      %p51 = scmp.eq.s32.totalorder %s29, 1
      %p52 = por %p50, %p51
      %p54 = scmp.ne.s32.totalorder %s37, %s53
      %p55 = scmp.eq.s32.totalorder %s29, 0
      %p56 = por %p54, %p55
      %s57 = ssub.s32 %s23, %s30
      %p58 = scmp.eq.s32.totalorder %s57, 0
      %s60 = sadd.s32 %s59, 1
      %s61 = scalar_select %p58, %s59, %s60
      %p64 = pneg %p58
      %p65 = scmp.eq.s32.totalorder %s23, 1
      %p66 = por %p64, %p65
      %p67 = scmp.ne.s32.totalorder %s59, %s62
      %p68 = scmp.eq.s32.totalorder %s23, 0
      %p69 = por %p67, %p68
      %p70 = scmp.ne.s32.totalorder %s59, %s62
      %p71 = scmp.eq.s32.totalorder %s28, 1
      %p72 = por %p70, %p71
      %p73 = scmp.ne.s32.totalorder %s62, %s63
      %p74 = scmp.eq.s32.totalorder %s28, 0
      %p75 = por %p73, %p74
      %p76 = scmp.ne.s32.totalorder %s62, %s63
      %p77 = scmp.eq.s32.totalorder %s29, 1
      %p78 = por %p76, %p77
      %p80 = scmp.ne.s32.totalorder %s63, %s79
      %p81 = scmp.eq.s32.totalorder %s29, 0
      %p82 = por %p80, %p81
      %s84 = sadd.s32 %s83, 1
      %p87 = scmp.eq.s32.totalorder %s23, 1
      %p88 = scmp.ne.s32.totalorder %s83, %s85
      %p89 = scmp.eq.s32.totalorder %s23, 0
      %p90 = por %p88, %p89
      %p91 = scmp.ne.s32.totalorder %s83, %s85
      %p92 = scmp.eq.s32.totalorder %s28, 1
      %p93 = por %p91, %p92
      %p94 = scmp.ne.s32.totalorder %s85, %s86
      %p95 = scmp.eq.s32.totalorder %s28, 0
      %p96 = por %p94, %p95
      %p97 = scmp.ne.s32.totalorder %s85, %s86
      %p98 = scmp.eq.s32.totalorder %s29, 1
      %p99 = por %p97, %p98
      %p101 = scmp.ne.s32.totalorder %s86, %s100
      %p102 = scmp.eq.s32.totalorder %s29, 0
      %p103 = por %p101, %p102
      %s105 = sadd.s32 %s104, 1
      %p108 = scmp.eq.s32.totalorder %s23, 1
      %p109 = scmp.ne.s32.totalorder %s104, %s106
      %p110 = scmp.eq.s32.totalorder %s23, 0
      %p111 = por %p109, %p110
      %p112 = scmp.ne.s32.totalorder %s104, %s106
      %p113 = scmp.eq.s32.totalorder %s28, 1
      %p114 = por %p112, %p113
      %p115 = scmp.ne.s32.totalorder %s106, %s107
      %p116 = scmp.eq.s32.totalorder %s28, 0
      %p117 = por %p115, %p116
      %p118 = scmp.ne.s32.totalorder %s106, %s107
      %p119 = scmp.eq.s32.totalorder %s29, 1
      %p120 = por %p118, %p119
      %p122 = scmp.ne.s32.totalorder %s107, %s121
      %p123 = scmp.eq.s32.totalorder %s29, 0
      %p124 = por %p122, %p123
      %s126 = sadd.s32 %s125, 1
      %p129 = scmp.eq.s32.totalorder %s23, 1
      %p130 = scmp.ne.s32.totalorder %s125, %s127
      %p131 = scmp.eq.s32.totalorder %s23, 0
      %p132 = por %p130, %p131
      %p133 = scmp.ne.s32.totalorder %s125, %s127
      %p134 = scmp.eq.s32.totalorder %s28, 1
      %p135 = por %p133, %p134
      %p136 = scmp.ne.s32.totalorder %s127, %s128
      %p137 = scmp.eq.s32.totalorder %s28, 0
      %p138 = por %p136, %p137
      %p139 = scmp.ne.s32.totalorder %s127, %s128
      %p140 = scmp.eq.s32.totalorder %s29, 1
      %p141 = por %p139, %p140
      %p143 = scmp.ne.s32.totalorder %s128, %s142
      %p144 = scmp.eq.s32.totalorder %s29, 0
      %p145 = por %p143, %p144
      %s147 = sadd.s32 %s146, 1
      %p150 = scmp.eq.s32.totalorder %s23, 1
      %p151 = scmp.ne.s32.totalorder %s146, %s148
      %p152 = scmp.eq.s32.totalorder %s23, 0
      %p153 = por %p151, %p152
      %p154 = scmp.ne.s32.totalorder %s146, %s148
      %p155 = scmp.eq.s32.totalorder %s28, 1
      %p156 = por %p154, %p155
      %p157 = scmp.ne.s32.totalorder %s148, %s149
      %p158 = scmp.eq.s32.totalorder %s28, 0
      %p159 = por %p157, %p158
      %p160 = scmp.ne.s32.totalorder %s148, %s149
      %p161 = scmp.eq.s32.totalorder %s29, 1
      %p162 = por %p160, %p161
      %p164 = scmp.ne.s32.totalorder %s149, %s163
      %p165 = scmp.eq.s32.totalorder %s29, 0
      %p166 = por %p164, %p165
      %s167 = ssub.s32 %s23, %s30
      %p168 = scmp.eq.s32.totalorder %s167, 0
      %s170 = sadd.s32 %s169, 1
      %s171 = scalar_select %p168, %s169, %s170
      %p174 = pneg %p168
      %p175 = scmp.eq.s32.totalorder %s23, 1
      %p176 = por %p174, %p175
      %p177 = scmp.ne.s32.totalorder %s169, %s172
      %p178 = scmp.eq.s32.totalorder %s23, 0
      %p179 = por %p177, %p178
      %p180 = scmp.ne.s32.totalorder %s169, %s172
      %p181 = scmp.eq.s32.totalorder %s28, 1
      %p182 = por %p180, %p181
      %p183 = scmp.ne.s32.totalorder %s172, %s173
      %p184 = scmp.eq.s32.totalorder %s28, 0
      %p185 = por %p183, %p184
      %p186 = scmp.ne.s32.totalorder %s172, %s173
      %p187 = scmp.eq.s32.totalorder %s29, 1
      %p188 = por %p186, %p187
      %p190 = scmp.ne.s32.totalorder %s173, %s189
      %p191 = scmp.eq.s32.totalorder %s29, 0
      %p192 = por %p190, %p191
      %s194 = sadd.s32 %s193, 1
      %p197 = scmp.eq.s32.totalorder %s23, 1
      %p198 = scmp.ne.s32.totalorder %s193, %s195
      %p199 = scmp.eq.s32.totalorder %s23, 0
      %p200 = por %p198, %p199
      %p201 = scmp.ne.s32.totalorder %s193, %s195
      %p202 = scmp.eq.s32.totalorder %s28, 1
      %p203 = por %p201, %p202
      %p204 = scmp.ne.s32.totalorder %s195, %s196
      %p205 = scmp.eq.s32.totalorder %s28, 0
      %p206 = por %p204, %p205
      %p207 = scmp.ne.s32.totalorder %s195, %s196
      %p208 = scmp.eq.s32.totalorder %s29, 1
      %p209 = por %p207, %p208
      %p211 = scmp.ne.s32.totalorder %s196, %s210
      %p212 = scmp.eq.s32.totalorder %s29, 0
      %p213 = por %p211, %p212
      %s215 = sadd.s32 %s214, 1
      %p218 = scmp.eq.s32.totalorder %s23, 1
      %p219 = scmp.ne.s32.totalorder %s214, %s216
      %p220 = scmp.eq.s32.totalorder %s23, 0
      %p221 = por %p219, %p220
      %p222 = scmp.ne.s32.totalorder %s214, %s216
      %p223 = scmp.eq.s32.totalorder %s28, 1
      %p224 = por %p222, %p223
      %p225 = scmp.ne.s32.totalorder %s216, %s217
      %p226 = scmp.eq.s32.totalorder %s28, 0
      %p227 = por %p225, %p226
      %p228 = scmp.ne.s32.totalorder %s216, %s217
      %p229 = scmp.eq.s32.totalorder %s29, 1
      %p230 = por %p228, %p229
      %p232 = scmp.ne.s32.totalorder %s217, %s231
      %p233 = scmp.eq.s32.totalorder %s29, 0
      %p234 = por %p232, %p233
      %s236 = sadd.s32 %s235, 1
      %p239 = scmp.eq.s32.totalorder %s23, 1
      %p240 = scmp.ne.s32.totalorder %s235, %s237
      %p241 = scmp.eq.s32.totalorder %s23, 0
      %p242 = por %p240, %p241
      %p243 = scmp.ne.s32.totalorder %s235, %s237
      %p244 = scmp.eq.s32.totalorder %s28, 1
      %p245 = por %p243, %p244
      %p246 = scmp.ne.s32.totalorder %s237, %s238
      %p247 = scmp.eq.s32.totalorder %s28, 0
      %p248 = por %p246, %p247
      %p249 = scmp.ne.s32.totalorder %s237, %s238
      %p250 = scmp.eq.s32.totalorder %s29, 1
      %p251 = por %p249, %p250
      %p253 = scmp.ne.s32.totalorder %s238, %s252
      %p254 = scmp.eq.s32.totalorder %s29, 0
      %p255 = por %p253, %p254
      %s256 = ssub.s32 %s23, %s30
      %p257 = scmp.eq.s32.totalorder %s256, 0
      %s259 = sadd.s32 %s258, 1
      %s260 = scalar_select %p257, %s258, %s259
      %p263 = pneg %p257
      %p264 = scmp.eq.s32.totalorder %s23, 1
      %p265 = por %p263, %p264
      %p266 = scmp.ne.s32.totalorder %s258, %s261
      %p267 = scmp.eq.s32.totalorder %s23, 0
      %p268 = por %p266, %p267
      %p269 = scmp.ne.s32.totalorder %s258, %s261
      %p270 = scmp.eq.s32.totalorder %s28, 1
      %p271 = por %p269, %p270
      %p272 = scmp.ne.s32.totalorder %s261, %s262
      %p273 = scmp.eq.s32.totalorder %s28, 0
      %p274 = por %p272, %p273
      %p275 = scmp.ne.s32.totalorder %s261, %s262
      %p276 = scmp.eq.s32.totalorder %s29, 1
      %p277 = por %p275, %p276
      %p279 = scmp.ne.s32.totalorder %s262, %s278
      %p280 = scmp.eq.s32.totalorder %s29, 0
      %p281 = por %p279, %p280
      %p282 = scmp.le.s32.totalorder 1, %s23
      %p283 = scmp.lt.s32.totalorder %s23, 3
      %p284 = pnand %p282, %p283
      %p285 = pneg %p284
      // Predicated region
      $region9: #{tpu_custom_call.1} parent=5 // pred_check
        _
      $region10: #{tpu_custom_call.1} parent=5 // pred_check_branch
        %287 = sbr.rel (%p284) target = $region12
      $region11: #{tpu_custom_call.1} parent=5 // pred_region
        %s288 = ssub.s32 %s23, 1
        // Predicated region
        $region13: #{tpu_custom_call.1} parent=11 // pred_check
          %p289 = pneg %p96
        $region14: #{tpu_custom_call.1} parent=11 // pred_check_branch
          %291 = sbr.rel (%p289) target = $region16
        $region15: #{tpu_custom_call.1} parent=11 // pred_region
          %293 = vsyncadd [#allocation6], 0
          %s294 = sshll.u32 %s2, 4
          %s295 = int_to_ptr.hbm [resolvable:$true] %s294
          %s296 = sshll.u32 [#allocation5], 4
          %s297 = int_to_ptr.vmem [resolvable:$true] %s296
          %302 = dma.hbm_to_vmem [thread:$0]  %s295, 2048, %s297, [#allocation6], 256, 256, 16
        $region16: #{tpu_custom_call.1} parent=11 // pred_fallthru
          _
        // Predicated region
        $region17: #{tpu_custom_call.1} parent=11 // pred_check
          %p303 = pneg %p117
        $region18: #{tpu_custom_call.1} parent=11 // pred_check_branch
          %305 = sbr.rel (%p303) target = $region20
        $region19: #{tpu_custom_call.1} parent=11 // pred_region
          _
        $region20: #{tpu_custom_call.1} parent=11 // pred_fallthru
          _
        // Predicated region
        $region21: #{tpu_custom_call.1} parent=11 // pred_check
          %p306 = pneg %p138
        $region22: #{tpu_custom_call.1} parent=11 // pred_check_branch
          %308 = sbr.rel (%p306) target = $region24
        $region23: #{tpu_custom_call.1} parent=11 // pred_region
          _
        $region24: #{tpu_custom_call.1} parent=11 // pred_fallthru
          _
        // Predicated region
        $region25: #{tpu_custom_call.1} parent=11 // pred_check
          %p309 = pneg %p159
        $region26: #{tpu_custom_call.1} parent=11 // pred_check_branch
          %311 = sbr.rel (%p309) target = $region28
        $region27: #{tpu_custom_call.1} parent=11 // pred_region
          _
        $region28: #{tpu_custom_call.1} parent=11 // pred_fallthru
          _
        // Predicated region
        $region29: #{tpu_custom_call.1} parent=11 // pred_check
          %p312 = pneg %p206
        $region30: #{tpu_custom_call.1} parent=11 // pred_check_branch
          %314 = sbr.rel (%p312) target = $region32
        $region31: #{tpu_custom_call.1} parent=11 // pred_region
          _
        $region32: #{tpu_custom_call.1} parent=11 // pred_fallthru
          _
        // Predicated region
        $region33: #{tpu_custom_call.1} parent=11 // pred_check
          %p315 = pneg %p227
        $region34: #{tpu_custom_call.1} parent=11 // pred_check_branch
          %317 = sbr.rel (%p315) target = $region36
        $region35: #{tpu_custom_call.1} parent=11 // pred_region
          _
        $region36: #{tpu_custom_call.1} parent=11 // pred_fallthru
          _
        // Predicated region
        $region37: #{tpu_custom_call.1} parent=11 // pred_check
          %p318 = pneg %p248
        $region38: #{tpu_custom_call.1} parent=11 // pred_check_branch
          %320 = sbr.rel (%p318) target = $region40
        $region39: #{tpu_custom_call.1} parent=11 // pred_region
          %322 = vsyncadd [#allocation6], 0
          %s323 = sshll.u32 %s9, 4
          %s324 = int_to_ptr.hbm [resolvable:$true] %s323
          %s325 = sshll.u32 [#allocation7], 4
          %s326 = int_to_ptr.vmem [resolvable:$true] %s325
          %331 = dma.hbm_to_vmem [thread:$0]  %s324, 512, %s326, [#allocation6], 256, 256, 16
        $region40: #{tpu_custom_call.1} parent=11 // pred_fallthru
          _
      $region12: #{tpu_custom_call.1} parent=5 // pred_fallthru
        _
      %p332 = scmp.lt.s32.totalorder %s23, 2
      // Predicated region
      $region41: #{tpu_custom_call.1} parent=5 // pred_check
        %p333 = pneg %p332
      $region42: #{tpu_custom_call.1} parent=5 // pred_check_branch
        %335 = sbr.rel (%p333) target = $region44
      $region43: #{tpu_custom_call.1} parent=5 // pred_region
        // Predicated region
        $region45: #{tpu_custom_call.1} parent=43 // pred_check
          %p336 = pneg %p43
        $region46: #{tpu_custom_call.1} parent=43 // pred_check_branch
          %338 = sbr.rel (%p336) target = $region48
        $region47: #{tpu_custom_call.1} parent=43 // pred_region
          %s339 = sand.u32 %s33, 1
          %s340 = scalar_lea.sflag [#allocation3], %s339
          %s341 = sand.u32 %s33, 1
          %s342 = smul.addr %s341, 4
          %s343 = scalar_lea.vmem [#allocation2], %s342
          %345 = vsyncadd %s340, 0
          %s346 = smul.addr %s23, 4
          %s347 = scalar_lea.hbm %s0, %s346
          %s349 = sshll.u32 %s347, 4
          %s350 = int_to_ptr.hbm [resolvable:$true] %s349
          %s351 = sshll.u32 %s343, 4
          %s352 = int_to_ptr.vmem [resolvable:$true] %s351
          %354 = dma.hbm_to_vmem [thread:$0]  %s350, 64, %s352, %s340
        $region48: #{tpu_custom_call.1} parent=43 // pred_fallthru
          _
        // Predicated region
        $region49: #{tpu_custom_call.1} parent=43 // pred_check
          %p355 = pneg %p69
        $region50: #{tpu_custom_call.1} parent=43 // pred_check_branch
          %357 = sbr.rel (%p355) target = $region52
        $region51: #{tpu_custom_call.1} parent=43 // pred_region
          %p358 = scmp.lt.s32.totalorder %s23, 1
          %s359 = scalar_select %p358, %s23, 1
          %s360 = smul.addr %s359, 2
          %s361 = smul.addr %s360, 4
          %s362 = scalar_lea.vmem %s1, %s361
        $region52: #{tpu_custom_call.1} parent=43 // pred_fallthru
          _
        // Predicated region
        $region53: #{tpu_custom_call.1} parent=43 // pred_check
          %p363 = pneg %p179
        $region54: #{tpu_custom_call.1} parent=43 // pred_check_branch
          %365 = sbr.rel (%p363) target = $region56
        $region55: #{tpu_custom_call.1} parent=43 // pred_region
          %p366 = scmp.lt.s32.totalorder %s23, 1
          %s367 = scalar_select %p366, %s23, 1
          %s368 = smul.addr %s367, 2
          %s369 = smul.addr %s368, 8
          %s370 = scalar_lea.vmem %s6, %s369
        $region56: #{tpu_custom_call.1} parent=43 // pred_fallthru
          _
      $region44: #{tpu_custom_call.1} parent=5 // pred_fallthru
        _
      %p371 = scmp.le.s32.totalorder 1, %s23
      %p372 = scmp.lt.s32.totalorder %s23, 3
      %p373 = pnand %p371, %p372
      %p374 = pneg %p373
      // Predicated region
      $region57: #{tpu_custom_call.1} parent=5 // pred_check
        _
      $region58: #{tpu_custom_call.1} parent=5 // pred_check_branch
        %376 = sbr.rel (%p373) target = $region60
      $region59: #{tpu_custom_call.1} parent=5 // pred_region
        %s377 = ssub.s32 %s23, 1
        %s378 = sand.u32 %s36, 1
        %s379 = scalar_lea.sflag [#allocation3], %s378
        %s380 = sand.u32 %s36, 1
        %s381 = smul.addr %s380, 4
        %s382 = scalar_lea.vmem [#allocation2], %s381
        // Predicated region
        $region61: #{tpu_custom_call.1} parent=59 // pred_check
          %p383 = pneg %p49
        $region62: #{tpu_custom_call.1} parent=59 // pred_check_branch
          %385 = sbr.rel (%p383) target = $region64
        $region63: #{tpu_custom_call.1} parent=59 // pred_region
          %387 = dma.done %s379, 64
        $region64: #{tpu_custom_call.1} parent=59 // pred_fallthru
          _
        // Predicated region
        $region65: #{tpu_custom_call.1} parent=59 // pred_check
          %p388 = pneg %p96
        $region66: #{tpu_custom_call.1} parent=59 // pred_check_branch
          %390 = sbr.rel (%p388) target = $region68
        $region67: #{tpu_custom_call.1} parent=59 // pred_region
          %392 = dma.done [#allocation6], 2048
        $region68: #{tpu_custom_call.1} parent=59 // pred_fallthru
          _
        // Predicated region
        $region69: #{tpu_custom_call.1} parent=59 // pred_check
          %p393 = pneg %p248
        $region70: #{tpu_custom_call.1} parent=59 // pred_check_branch
          %395 = sbr.rel (%p393) target = $region72
        $region71: #{tpu_custom_call.1} parent=59 // pred_region
          %397 = dma.done [#allocation6], 512
        $region72: #{tpu_custom_call.1} parent=59 // pred_fallthru
          _
        %s398 = sand.u32 %s36, 1
        %s399 = scalar_lea.sflag [#allocation3], %s398
        %s400 = sand.u32 %s36, 1
        %s401 = smul.addr %s400, 4
        %s402 = scalar_lea.vmem [#allocation2], %s401
        %p403 = pneg %p49
        %p404 = pneg %p46
        %p405 = scmp.lt.s32.totalorder %s28, 1
        %s406 = scalar_select %p405, %s28, 1
        %s407 = smul.addr %s406, 2
        %s408 = smul.addr %s407, 4
        %s409 = scalar_lea.vmem %s1, %s408
        %p410 = pneg %p75
        %p411 = pneg %p72
        %p412 = pneg %p96
        %p413 = pneg %p93
        %p414 = pneg %p117
        %p415 = pneg %p114
        %p416 = pneg %p138
        %p417 = pneg %p135
        %p418 = pneg %p159
        %p419 = pneg %p156
        %p420 = scmp.lt.s32.totalorder %s28, 1
        %s421 = scalar_select %p420, %s28, 1
        %s422 = smul.addr %s421, 2
        %s423 = smul.addr %s422, 8
        %s424 = scalar_lea.vmem %s6, %s423
        %p425 = pneg %p185
        %p426 = pneg %p182
        %p427 = pneg %p206
        %p428 = pneg %p203
        %p429 = pneg %p227
        %p430 = pneg %p224
        %p431 = pneg %p248
        %p432 = pneg %p245
        %p433 = pneg %p274
        %p434 = pneg %p271
        %s435 = sand.u32 %s261, 1
        %s436 = scalar_lea.sflag [#allocation4], %s435
        %s437 = sand.u32 %s261, 1
        %s438 = smul.addr %s437, 32
        %s439 = scalar_lea.vmem [#allocation8], %s438
        %p440 = scmp.lt.s32.totalorder %s28, 1
        %s441 = scalar_select %p440, %s28, 1
        %s442 = smul.addr %s441, 2
        %s443 = smul.addr %s442, 4
        %s444 = scalar_lea.vmem %s1, %s443
        %p445 = scmp.lt.s32.totalorder %s28, 1
        %s446 = scalar_select %p445, %s28, 1
        %s447 = smul.addr %s446, 2
        %s448 = smul.addr %s447, 8
        %s449 = scalar_lea.vmem %s6, %s448
        %v450 = vld [vmem:[%s382] sm:$0xf]
        %v451 = vld [vmem:[#allocation5] sm:$0xff]
        %v452 = vld [vmem:[#allocation5 + $0x8] sm:$0xff]
        %v453 = vld [vmem:[#allocation5 + $0x10] sm:$0xff]
        %v454 = vld [vmem:[#allocation5 + $0x18] sm:$0xff]
        %v455 = vld [vmem:[#allocation5 + $0x20] sm:$0xff]
        %v456 = vld [vmem:[#allocation5 + $0x28] sm:$0xff]
        %v457 = vld [vmem:[#allocation5 + $0x30] sm:$0xff]
        %v458 = vld [vmem:[#allocation5 + $0x38] sm:$0xff]
        %v459 = vld [vmem:[#allocation5 + $0x40] sm:$0xff]
        %v460 = vld [vmem:[#allocation5 + $0x48] sm:$0xff]
        %v461 = vld [vmem:[#allocation5 + $0x50] sm:$0xff]
        %v462 = vld [vmem:[#allocation5 + $0x58] sm:$0xff]
        %v463 = vld [vmem:[#allocation5 + $0x60] sm:$0xff]
        %v464 = vld [vmem:[#allocation5 + $0x68] sm:$0xff]
        %v465 = vld [vmem:[#allocation5 + $0x70] sm:$0xff]
        %v466 = vld [vmem:[#allocation5 + $0x78] sm:$0xff]
        %vm467 = vcmask 523264
        %v469 = vsel %vm467, %v450, 0
        %471 = vmatpush.msra.mxu0 0.0
        %472 = vmatpush.msra.mxu0 0.0
        %473 = vmatpush.msra.mxu0 0.0
        %474 = vmatpush.msra.mxu0 0.0
        %475 = vmatpush.msra.mxu0 0.0
        %476 = vmatpush.msra.mxu0 0.0
        %477 = vmatpush.msra.mxu0 0.0
        %478 = vmatpush.msra.mxu0 0.0
        %479 = vmatpush.msra.mxu0 %v465
        %480 = vmatpush.msra.mxu0 %v463
        %481 = vmatpush.msra.mxu0 %v461
        %482 = vmatpush.msra.mxu0 %v459
        %483 = vmatpush.msra.mxu0 %v457
        %484 = vmatpush.msra.mxu0 %v455
        %485 = vmatpush.msra.mxu0 %v453
        %486 = vmatpush.msra.mxu0 %v451
        %487 = vmatmul.f32.gmra.mxu0 %v469
        %v488 = vpop.f32.mrf.mxu0
        %v489 = vadd.f32 0.0, %v488
        %490 = vdwg.mxu0
        %491 = vmatpush.msra.mxu0 0.0
        %492 = vmatpush.msra.mxu0 0.0
        %493 = vmatpush.msra.mxu0 0.0
        %494 = vmatpush.msra.mxu0 0.0
        %495 = vmatpush.msra.mxu0 0.0
        %496 = vmatpush.msra.mxu0 0.0
        %497 = vmatpush.msra.mxu0 0.0
        %498 = vmatpush.msra.mxu0 0.0
        %499 = vmatpush.msra.mxu0 %v466
        %500 = vmatpush.msra.mxu0 %v464
        %501 = vmatpush.msra.mxu0 %v462
        %502 = vmatpush.msra.mxu0 %v460
        %503 = vmatpush.msra.mxu0 %v458
        %504 = vmatpush.msra.mxu0 %v456
        %505 = vmatpush.msra.mxu0 %v454
        %506 = vmatpush.msra.mxu0 %v452
        %507 = vmatmul.f32.gmra.mxu0 %v469
        %v508 = vpop.f32.mrf.mxu0
        %v509 = vadd.f32 0.0, %v508
        %510 = vdwg.mxu0
        %v511 = vld [vmem:[%s444] sm:$0xff]
        %513 = vst [vmem:[#allocation1] ss:$2 sm:$0xff] %v511
        %v514 = vld.sshfl [vmem:[#allocation1] sm:$0xff pattern:$0x75316420]
        %v515 = vld.sshfl [vmem:[#allocation1 + $0x8] sm:$0xff pattern:$0x75316420]
        %v520 = vrot.slane %v489, 4
        %v521 = vrot.slane %v509, 4
        %vm524 = vcmask 1043456
        %v525 = vsel %vm524, %v514, %v520
        %v526 = vsel %vm524, %v515, %v521
        %v527 = vadd.f32 %v525, %v526
        %528 = vadd.xlane.f32.xlu0 %v527
        %v529 = vpop.xlane.xlu0 %528
        %v530 = vrot.slane %v529, 4
        %v531 = vadd.f32 %v529, %v530
        %v532 = vrot.slane %v531, 2
        %v533 = vadd.f32 %v531, %v532
        %v534 = vrot.slane %v533, 1
        %v535 = vadd.f32 %v533, %v534
        %v536 = vrcp.pop 2048.0
        %v537 = vmul.f32 2048.0, %v536
        %v538 = vsub.f32 1.0, %v537
        %v539 = vmul.f32 %v536, %v538
        %v540 = vadd.f32 %v536, %v539
        %vm541 = vweird.f32 %v536
        %v542 = vsel %vm541, %v536, %v540
        %v543 = vmul.f32 %v535, %v542
        %v544 = vsub.f32 %v525, %v543
        %v545 = vsub.f32 %v526, %v543
        %v546 = vmul.f32 %v544, %v544
        %v547 = vmul.f32 %v545, %v545
        %v548 = vadd.f32 %v546, %v547
        %549 = vadd.xlane.f32.xlu0 %v548
        %v550 = vpop.xlane.xlu0 %549
        %v551 = vrot.slane %v550, 4
        %v552 = vadd.f32 %v550, %v551
        %v553 = vrot.slane %v552, 2
        %v554 = vadd.f32 %v552, %v553
        %v555 = vrot.slane %v554, 1
        %v556 = vadd.f32 %v554, %v555
        %v557 = vmul.f32 %v556, %v542
        %v558 = vadd.f32 %v557, 1e-05
        %v559 = vrsqrt.pop %v558
        %v560 = vmul.f32 %v559, %v558
        %v561 = vmul.f32 %v560, %v559
        %v562 = vmul.f32 0.5, %v561
        %v563 = vsub.f32 1.5, %v562
        %v564 = vmul.f32 %v559, %v563
        %vm565 = vweird.f32 %v558
        %vm566 = vweird.f32 %v559
        %vm567 = vmor %vm565, %vm566
        %v568 = vsel %vm567, %v559, %v564
        %v569 = vmul.f32 %v544, %v568
        %v570 = vmul.f32 %v545, %v568
        %v571 = vld [vmem:[%s3] sm:$0xff]
        %573 = vset.pattern.permute.xlu0 0
        %574 = vperm.xlu0 %573, %v571
        %v575 = vpop.permute.xlu0 %574
        %v577 = vmul.f32 %v569, %v575
        %v578 = vmul.f32 %v570, %v575
        %v579 = vld [vmem:[%s4] sm:$0xff]
        %581 = vset.pattern.permute.xlu0 0
        %582 = vperm.xlu0 %581, %v579
        %v583 = vpop.permute.xlu0 %582
        %v585 = vadd.f32 %v577, %v583
        %v586 = vadd.f32 %v578, %v583
        %v587 = vxor.u32 %v585, 2147483648
        %v588 = vxor.u32 %v586, 2147483648
        %v589 = vmul.f32 %v587, 1.442695
        %v590 = vpow.pop %v589
        %v591 = vmul.f32 %v588, 1.442695
        %v592 = vpow.pop %v591
        %v593 = vadd.f32 %v590, 1.0
        %v594 = vadd.f32 %v592, 1.0
        %v595 = vrcp.pop %v593
        %v596 = vmul.f32 %v593, %v595
        %v597 = vsub.f32 1.0, %v596
        %v598 = vmul.f32 %v595, %v597
        %v599 = vadd.f32 %v595, %v598
        %vm600 = vweird.f32 %v593
        %vm601 = vweird.f32 %v595
        %vm602 = vmor %vm600, %vm601
        %v603 = vsel %vm602, %v595, %v599
        %v604 = vand.u32 2147483647, %v593
        %vm605 = vcmp.eq.f32.partialorder %v604, 8.507059e+37
        %v606 = vand.u32 %v593, 2147483648
        %v607 = vor.u32 1.1754944e-38, %v606
        %v608 = vsel %vm605, %v607, %v603
        %v609 = vmul.f32 1.0, %v608
        %v610 = vrcp.pop %v594
        %v611 = vmul.f32 %v594, %v610
        %v612 = vsub.f32 1.0, %v611
        %v613 = vmul.f32 %v610, %v612
        %v614 = vadd.f32 %v610, %v613
        %vm615 = vweird.f32 %v594
        %vm616 = vweird.f32 %v610
        %vm617 = vmor %vm615, %vm616
        %v618 = vsel %vm617, %v610, %v614
        %v619 = vand.u32 2147483647, %v594
        %vm620 = vcmp.eq.f32.partialorder %v619, 8.507059e+37
        %v621 = vand.u32 %v594, 2147483648
        %v622 = vor.u32 1.1754944e-38, %v621
        %v623 = vsel %vm620, %v622, %v618
        %v624 = vmul.f32 1.0, %v623
        %v625 = vmul.f32 %v585, %v609
        %v626 = vmul.f32 %v586, %v624
        %v627 = vld [vmem:[#allocation7] sm:$0xff]
        %v628 = vld [vmem:[#allocation7 + $0x8] sm:$0xff]
        %v629 = vld [vmem:[#allocation7 + $0x10] sm:$0x1]
        %v630 = vld [vmem:[#allocation7 + $0x18] sm:$0x1]
        %632 = vrot.lane.b32.xlu0 %v626, 17
        %v633 = vpop.permute.xlu0 %632
        %636 = vrot.lane.b32.xlu0 %v625, 17
        %v637 = vpop.permute.xlu0 %636
        %vm638 = vcmask 138240
        %v639 = vsel %vm638, %v637, %v633
        %v642 = vsel %vm638, %v633, %v637
        %v643 = vperm.slane %v627, 0
        %v644 = vperm.slane %v628, 0
        %v645 = vmul.f32 %v642, %v643
        %v646 = vmul.f32 %v639, %v644
        %647 = vrot.lane.b32.xlu0 %v626, 16
        %v648 = vpop.permute.xlu0 %647
        %650 = vrot.lane.b32.xlu0 %v625, 16
        %v651 = vpop.permute.xlu0 %650
        %vm652 = vcmask 130048
        %v653 = vsel %vm652, %v651, %v648
        %v656 = vsel %vm652, %v648, %v651
        %v657 = vperm.slane %v627, 1
        %v658 = vperm.slane %v628, 1
        %v659 = vmul.f32 %v656, %v657
        %v660 = vmul.f32 %v653, %v658
        %661 = vrot.lane.b32.xlu0 %v626, 15
        %v662 = vpop.permute.xlu0 %661
        %664 = vrot.lane.b32.xlu0 %v625, 15
        %v665 = vpop.permute.xlu0 %664
        %vm666 = vcmask 121856
        %v667 = vsel %vm666, %v665, %v662
        %v670 = vsel %vm666, %v662, %v665
        %v671 = vperm.slane %v627, 2
        %v672 = vperm.slane %v628, 2
        %v673 = vmul.f32 %v670, %v671
        %v674 = vmul.f32 %v667, %v672
        %675 = vrot.lane.b32.xlu0 %v626, 1
        %v676 = vpop.permute.xlu0 %675
        %678 = vrot.lane.b32.xlu0 %v625, 1
        %v679 = vpop.permute.xlu0 %678
        %vm680 = vcmask 7168
        %v681 = vsel %vm680, %v679, %v676
        %v684 = vsel %vm680, %v676, %v679
        %v685 = vperm.slane %v627, 3
        %v686 = vperm.slane %v628, 3
        %v687 = vmul.f32 %v684, %v685
        %v688 = vmul.f32 %v681, %v686
        %v689 = vperm.slane %v627, 4
        %v690 = vperm.slane %v628, 4
        %v691 = vmul.f32 %v625, %v689
        %v692 = vmul.f32 %v626, %v690
        %693 = vrot.lane.b32.xlu0 %v625, 127
        %v694 = vpop.permute.xlu0 %693
        %695 = vrot.lane.b32.xlu0 %v626, 127
        %v696 = vpop.permute.xlu0 %695
        %vm697 = vcmask 1039360
        %v698 = vsel %vm697, %v694, %v696
        %v702 = vsel %vm697, %v696, %v694
        %v703 = vperm.slane %v627, 5
        %v704 = vperm.slane %v628, 5
        %v705 = vmul.f32 %v698, %v703
        %v706 = vmul.f32 %v702, %v704
        %707 = vrot.lane.b32.xlu0 %v625, 113
        %v708 = vpop.permute.xlu0 %707
        %709 = vrot.lane.b32.xlu0 %v626, 113
        %v710 = vpop.permute.xlu0 %709
        %vm711 = vcmask 924672
        %v712 = vsel %vm711, %v708, %v710
        %v716 = vsel %vm711, %v710, %v708
        %v717 = vperm.slane %v627, 6
        %v718 = vperm.slane %v628, 6
        %v719 = vmul.f32 %v712, %v717
        %v720 = vmul.f32 %v716, %v718
        %721 = vrot.lane.b32.xlu0 %v625, 112
        %v722 = vpop.permute.xlu0 %721
        %723 = vrot.lane.b32.xlu0 %v626, 112
        %v724 = vpop.permute.xlu0 %723
        %vm725 = vcmask 916480
        %v726 = vsel %vm725, %v722, %v724
        %v730 = vsel %vm725, %v724, %v722
        %v731 = vperm.slane %v627, 7
        %v732 = vperm.slane %v628, 7
        %v733 = vmul.f32 %v726, %v731
        %v734 = vmul.f32 %v730, %v732
        %735 = vrot.lane.b32.xlu0 %v625, 111
        %v736 = vpop.permute.xlu0 %735
        %737 = vrot.lane.b32.xlu0 %v626, 111
        %v738 = vpop.permute.xlu0 %737
        %vm739 = vcmask 908288
        %v740 = vsel %vm739, %v736, %v738
        %v744 = vsel %vm739, %v738, %v736
        %v745 = vperm.slane %v629, 0
        %v746 = vperm.slane %v630, 0
        %v747 = vmul.f32 %v740, %v745
        %v748 = vmul.f32 %v744, %v746
        %v749 = vld [vmem:[%s5] sm:$0xff]
        %v750 = vld [vmem:[%s5 + $0x8] sm:$0xff]
        %v751 = vld [vmem:[%s449] sm:$0xff]
        %v752 = vld [vmem:[%s449 + $0x8] sm:$0xff]
        %754 = vset.pattern.permute.xlu0 0
        %755 = vperm.xlu0 %754, %v751
        %v756 = vpop.permute.xlu0 %755
        %759 = vset.pattern.permute.xlu0 0
        %760 = vperm.xlu0 %759, %v752
        %v761 = vpop.permute.xlu0 %760
        %vm763 = vcmask 588800
        %v765 = vsel %vm763, %v749, 0
        %v768 = vsel %vm763, %v750, 0
        %770 = vmatpush.msra.mxu0 0.0
        %771 = vmatpush.msra.mxu0 0.0
        %772 = vmatpush.msra.mxu0 0.0
        %773 = vmatpush.msra.mxu0 0.0
        %774 = vmatpush.msra.mxu0 0.0
        %775 = vmatpush.msra.mxu0 0.0
        %776 = vmatpush.msra.mxu0 0.0
        %777 = vmatpush.msra.mxu0 %v747
        %778 = vmatpush.msra.mxu0 %v733
        %779 = vmatpush.msra.mxu0 %v719
        %780 = vmatpush.msra.mxu0 %v705
        %781 = vmatpush.msra.mxu0 %v691
        %782 = vmatpush.msra.mxu0 %v687
        %783 = vmatpush.msra.mxu0 %v673
        %784 = vmatpush.msra.mxu0 %v659
        %785 = vmatpush.msra.mxu0 %v645
        %786 = vmatmul.f32.gmra.mxu0 %v765
        %v787 = vpop.f32.mrf.mxu0
        %v788 = vadd.f32 %v756, %v787
        %789 = vmatmul.f32.gmra.mxu0 %v768
        %v790 = vpop.f32.mrf.mxu0
        %v791 = vadd.f32 %v761, %v790
        %792 = vdwg.mxu0
        %793 = vmatpush.msra.mxu0 0.0
        %794 = vmatpush.msra.mxu0 0.0
        %795 = vmatpush.msra.mxu0 0.0
        %796 = vmatpush.msra.mxu0 0.0
        %797 = vmatpush.msra.mxu0 0.0
        %798 = vmatpush.msra.mxu0 0.0
        %799 = vmatpush.msra.mxu0 0.0
        %800 = vmatpush.msra.mxu0 %v748
        %801 = vmatpush.msra.mxu0 %v734
        %802 = vmatpush.msra.mxu0 %v720
        %803 = vmatpush.msra.mxu0 %v706
        %804 = vmatpush.msra.mxu0 %v692
        %805 = vmatpush.msra.mxu0 %v688
        %806 = vmatpush.msra.mxu0 %v674
        %807 = vmatpush.msra.mxu0 %v660
        %808 = vmatpush.msra.mxu0 %v646
        %809 = vmatmul.f32.gmra.mxu0 %v765
        %v810 = vpop.f32.mrf.mxu0
        %v811 = vadd.f32 %v756, %v810
        %812 = vmatmul.f32.gmra.mxu0 %v768
        %v813 = vpop.f32.mrf.mxu0
        %v814 = vadd.f32 %v761, %v813
        %815 = vdwg.mxu0
        %v816 = vxor.u32 %v788, 2147483648
        %v817 = vxor.u32 %v811, 2147483648
        %v818 = vxor.u32 %v791, 2147483648
        %v819 = vxor.u32 %v814, 2147483648
        %v820 = vmul.f32 %v816, 1.442695
        %v821 = vpow.pop %v820
        %v822 = vmul.f32 %v817, 1.442695
        %v823 = vpow.pop %v822
        %v824 = vmul.f32 %v818, 1.442695
        %v825 = vpow.pop %v824
        %v826 = vmul.f32 %v819, 1.442695
        %v827 = vpow.pop %v826
        %v828 = vadd.f32 %v821, 1.0
        %v829 = vadd.f32 %v823, 1.0
        %v830 = vadd.f32 %v825, 1.0
        %v831 = vadd.f32 %v827, 1.0
        %v832 = vrcp.pop %v828
        %v833 = vmul.f32 %v828, %v832
        %v834 = vsub.f32 1.0, %v833
        %v835 = vmul.f32 %v832, %v834
        %v836 = vadd.f32 %v832, %v835
        %vm837 = vweird.f32 %v828
        %vm838 = vweird.f32 %v832
        %vm839 = vmor %vm837, %vm838
        %v840 = vsel %vm839, %v832, %v836
        %v841 = vand.u32 2147483647, %v828
        %vm842 = vcmp.eq.f32.partialorder %v841, 8.507059e+37
        %v843 = vand.u32 %v828, 2147483648
        %v844 = vor.u32 1.1754944e-38, %v843
        %v845 = vsel %vm842, %v844, %v840
        %v846 = vmul.f32 1.0, %v845
        %v847 = vrcp.pop %v829
        %v848 = vmul.f32 %v829, %v847
        %v849 = vsub.f32 1.0, %v848
        %v850 = vmul.f32 %v847, %v849
        %v851 = vadd.f32 %v847, %v850
        %vm852 = vweird.f32 %v829
        %vm853 = vweird.f32 %v847
        %vm854 = vmor %vm852, %vm853
        %v855 = vsel %vm854, %v847, %v851
        %v856 = vand.u32 2147483647, %v829
        %vm857 = vcmp.eq.f32.partialorder %v856, 8.507059e+37
        %v858 = vand.u32 %v829, 2147483648
        %v859 = vor.u32 1.1754944e-38, %v858
        %v860 = vsel %vm857, %v859, %v855
        %v861 = vmul.f32 1.0, %v860
        %v862 = vrcp.pop %v830
        %v863 = vmul.f32 %v830, %v862
        %v864 = vsub.f32 1.0, %v863
        %v865 = vmul.f32 %v862, %v864
        %v866 = vadd.f32 %v862, %v865
        %vm867 = vweird.f32 %v830
        %vm868 = vweird.f32 %v862
        %vm869 = vmor %vm867, %vm868
        %v870 = vsel %vm869, %v862, %v866
        %v871 = vand.u32 2147483647, %v830
        %vm872 = vcmp.eq.f32.partialorder %v871, 8.507059e+37
        %v873 = vand.u32 %v830, 2147483648
        %v874 = vor.u32 1.1754944e-38, %v873
        %v875 = vsel %vm872, %v874, %v870
        %v876 = vmul.f32 1.0, %v875
        %v877 = vrcp.pop %v831
        %v878 = vmul.f32 %v831, %v877
        %v879 = vsub.f32 1.0, %v878
        %v880 = vmul.f32 %v877, %v879
        %v881 = vadd.f32 %v877, %v880
        %vm882 = vweird.f32 %v831
        %vm883 = vweird.f32 %v877
        %vm884 = vmor %vm882, %vm883
        %v885 = vsel %vm884, %v877, %v881
        %v886 = vand.u32 2147483647, %v831
        %vm887 = vcmp.eq.f32.partialorder %v886, 8.507059e+37
        %v888 = vand.u32 %v831, 2147483648
        %v889 = vor.u32 1.1754944e-38, %v888
        %v890 = vsel %vm887, %v889, %v885
        %v891 = vmul.f32 1.0, %v890
        %v892 = vmul.f32 %v788, %v846
        %v893 = vmul.f32 %v811, %v861
        %v894 = vmul.f32 %v791, %v876
        %v895 = vmul.f32 %v814, %v891
        %898 = vrot.lane.b32.xlu0 %v893, 17
        %v899 = vpop.permute.xlu0 %898
        %900 = vrot.lane.b32.xlu0 %v895, 17
        %v901 = vpop.permute.xlu0 %900
        %906 = vrot.lane.b32.xlu0 %v892, 17
        %v907 = vpop.permute.xlu0 %906
        %908 = vrot.lane.b32.xlu0 %v894, 17
        %v909 = vpop.permute.xlu0 %908
        %v910 = vsel %vm638, %v907, %v899
        %v911 = vsel %vm638, %v909, %v901
        %v916 = vsel %vm638, %v899, %v907
        %v917 = vsel %vm638, %v901, %v909
        %v918 = vmul.f32 %v916, %v643
        %v919 = vmul.f32 %v910, %v644
        %v920 = vmul.f32 %v917, %v643
        %v921 = vmul.f32 %v911, %v644
        %922 = vrot.lane.b32.xlu0 %v893, 16
        %v923 = vpop.permute.xlu0 %922
        %924 = vrot.lane.b32.xlu0 %v895, 16
        %v925 = vpop.permute.xlu0 %924
        %928 = vrot.lane.b32.xlu0 %v892, 16
        %v929 = vpop.permute.xlu0 %928
        %930 = vrot.lane.b32.xlu0 %v894, 16
        %v931 = vpop.permute.xlu0 %930
        %v932 = vsel %vm652, %v929, %v923
        %v933 = vsel %vm652, %v931, %v925
        %v938 = vsel %vm652, %v923, %v929
        %v939 = vsel %vm652, %v925, %v931
        %v940 = vmul.f32 %v938, %v657
        %v941 = vmul.f32 %v932, %v658
        %v942 = vmul.f32 %v939, %v657
        %v943 = vmul.f32 %v933, %v658
        %944 = vrot.lane.b32.xlu0 %v893, 15
        %v945 = vpop.permute.xlu0 %944
        %946 = vrot.lane.b32.xlu0 %v895, 15
        %v947 = vpop.permute.xlu0 %946
        %950 = vrot.lane.b32.xlu0 %v892, 15
        %v951 = vpop.permute.xlu0 %950
        %952 = vrot.lane.b32.xlu0 %v894, 15
        %v953 = vpop.permute.xlu0 %952
        %v954 = vsel %vm666, %v951, %v945
        %v955 = vsel %vm666, %v953, %v947
        %v960 = vsel %vm666, %v945, %v951
        %v961 = vsel %vm666, %v947, %v953
        %v962 = vmul.f32 %v960, %v671
        %v963 = vmul.f32 %v954, %v672
        %v964 = vmul.f32 %v961, %v671
        %v965 = vmul.f32 %v955, %v672
        %966 = vrot.lane.b32.xlu0 %v893, 1
        %v967 = vpop.permute.xlu0 %966
        %968 = vrot.lane.b32.xlu0 %v895, 1
        %v969 = vpop.permute.xlu0 %968
        %972 = vrot.lane.b32.xlu0 %v892, 1
        %v973 = vpop.permute.xlu0 %972
        %974 = vrot.lane.b32.xlu0 %v894, 1
        %v975 = vpop.permute.xlu0 %974
        %v976 = vsel %vm680, %v973, %v967
        %v977 = vsel %vm680, %v975, %v969
        %v982 = vsel %vm680, %v967, %v973
        %v983 = vsel %vm680, %v969, %v975
        %v984 = vmul.f32 %v982, %v685
        %v985 = vmul.f32 %v976, %v686
        %v986 = vmul.f32 %v983, %v685
        %v987 = vmul.f32 %v977, %v686
        %v988 = vmul.f32 %v892, %v689
        %v989 = vmul.f32 %v893, %v690
        %v990 = vmul.f32 %v894, %v689
        %v991 = vmul.f32 %v895, %v690
        %992 = vrot.lane.b32.xlu0 %v892, 127
        %v993 = vpop.permute.xlu0 %992
        %994 = vrot.lane.b32.xlu0 %v893, 127
        %v995 = vpop.permute.xlu0 %994
        %996 = vrot.lane.b32.xlu0 %v894, 127
        %v997 = vpop.permute.xlu0 %996
        %998 = vrot.lane.b32.xlu0 %v895, 127
        %v999 = vpop.permute.xlu0 %998
        %v1000 = vsel %vm697, %v993, %v995
        %v1001 = vsel %vm697, %v997, %v999
        %v1008 = vsel %vm697, %v995, %v993
        %v1009 = vsel %vm697, %v999, %v997
        %v1010 = vmul.f32 %v1000, %v703
        %v1011 = vmul.f32 %v1008, %v704
        %v1012 = vmul.f32 %v1001, %v703
        %v1013 = vmul.f32 %v1009, %v704
        %1014 = vrot.lane.b32.xlu0 %v892, 113
        %v1015 = vpop.permute.xlu0 %1014
        %1016 = vrot.lane.b32.xlu0 %v893, 113
        %v1017 = vpop.permute.xlu0 %1016
        %1018 = vrot.lane.b32.xlu0 %v894, 113
        %v1019 = vpop.permute.xlu0 %1018
        %1020 = vrot.lane.b32.xlu0 %v895, 113
        %v1021 = vpop.permute.xlu0 %1020
        %v1022 = vsel %vm711, %v1015, %v1017
        %v1023 = vsel %vm711, %v1019, %v1021
        %v1030 = vsel %vm711, %v1017, %v1015
        %v1031 = vsel %vm711, %v1021, %v1019
        %v1032 = vmul.f32 %v1022, %v717
        %v1033 = vmul.f32 %v1030, %v718
        %v1034 = vmul.f32 %v1023, %v717
        %v1035 = vmul.f32 %v1031, %v718
        %1036 = vrot.lane.b32.xlu0 %v892, 112
        %v1037 = vpop.permute.xlu0 %1036
        %1038 = vrot.lane.b32.xlu0 %v893, 112
        %v1039 = vpop.permute.xlu0 %1038
        %1040 = vrot.lane.b32.xlu0 %v894, 112
        %v1041 = vpop.permute.xlu0 %1040
        %1042 = vrot.lane.b32.xlu0 %v895, 112
        %v1043 = vpop.permute.xlu0 %1042
        %v1044 = vsel %vm725, %v1037, %v1039
        %v1045 = vsel %vm725, %v1041, %v1043
        %v1052 = vsel %vm725, %v1039, %v1037
        %v1053 = vsel %vm725, %v1043, %v1041
        %v1054 = vmul.f32 %v1044, %v731
        %v1055 = vmul.f32 %v1052, %v732
        %v1056 = vmul.f32 %v1045, %v731
        %v1057 = vmul.f32 %v1053, %v732
        %1058 = vrot.lane.b32.xlu0 %v892, 111
        %v1059 = vpop.permute.xlu0 %1058
        %1060 = vrot.lane.b32.xlu0 %v893, 111
        %v1061 = vpop.permute.xlu0 %1060
        %1062 = vrot.lane.b32.xlu0 %v894, 111
        %v1063 = vpop.permute.xlu0 %1062
        %1064 = vrot.lane.b32.xlu0 %v895, 111
        %v1065 = vpop.permute.xlu0 %1064
        %v1066 = vsel %vm739, %v1059, %v1061
        %v1067 = vsel %vm739, %v1063, %v1065
        %v1074 = vsel %vm739, %v1061, %v1059
        %v1075 = vsel %vm739, %v1065, %v1063
        %v1076 = vmul.f32 %v1066, %v745
        %v1077 = vmul.f32 %v1074, %v746
        %v1078 = vmul.f32 %v1067, %v745
        %v1079 = vmul.f32 %v1075, %v746
        %v1080 = vld [vmem:[%s7] sm:$0xff]
        %v1081 = vld [vmem:[%s7 + $0x8] sm:$0xff]
        %v1082 = vld [vmem:[%s7 + $0x10] sm:$0xff]
        %v1083 = vld [vmem:[%s7 + $0x18] sm:$0xff]
        %v1084 = vld [vmem:[%s8] sm:$0xff]
        %v1085 = vld [vmem:[%s8 + $0x8] sm:$0xff]
        %1087 = vset.pattern.permute.xlu0 0
        %1088 = vperm.xlu0 %1087, %v1084
        %v1089 = vpop.permute.xlu0 %1088
        %1092 = vset.pattern.permute.xlu0 0
        %1093 = vperm.xlu0 %1092, %v1085
        %v1094 = vpop.permute.xlu0 %1093
        %vm1096 = vcmask 195584
        %v1098 = vsel %vm1096, %v1081, 0
        %v1101 = vsel %vm1096, %v1083, 0
        %1103 = vmatpush.msra.mxu0 %v1056
        %1104 = vmatpush.msra.mxu0 %v1054
        %1105 = vmatpush.msra.mxu0 %v1034
        %1106 = vmatpush.msra.mxu0 %v1032
        %1107 = vmatpush.msra.mxu0 %v1012
        %1108 = vmatpush.msra.mxu0 %v1010
        %1109 = vmatpush.msra.mxu0 %v990
        %1110 = vmatpush.msra.mxu0 %v988
        %1111 = vmatpush.msra.mxu0 %v986
        %1112 = vmatpush.msra.mxu0 %v984
        %1113 = vmatpush.msra.mxu0 %v964
        %1114 = vmatpush.msra.mxu0 %v962
        %1115 = vmatpush.msra.mxu0 %v942
        %1116 = vmatpush.msra.mxu0 %v940
        %1117 = vmatpush.msra.mxu0 %v920
        %1118 = vmatpush.msra.mxu0 %v918
        %1119 = vmatmul.f32.gmra.mxu0 %v1080
        %v1120 = vpop.f32.mrf.mxu0
        %v1121 = vadd.f32 %v1089, %v1120
        %1122 = vmatmul.f32.gmra.mxu0 %v1082
        %v1123 = vpop.f32.mrf.mxu0
        %v1124 = vadd.f32 %v1094, %v1123
        %1125 = vdwg.mxu0
        %1126 = vmatpush.msra.mxu0 0.0
        %1127 = vmatpush.msra.mxu0 0.0
        %1128 = vmatpush.msra.mxu0 0.0
        %1129 = vmatpush.msra.mxu0 0.0
        %1130 = vmatpush.msra.mxu0 0.0
        %1131 = vmatpush.msra.mxu0 0.0
        %1132 = vmatpush.msra.mxu0 0.0
        %1133 = vmatpush.msra.mxu0 0.0
        %1134 = vmatpush.msra.mxu0 0.0
        %1135 = vmatpush.msra.mxu0 0.0
        %1136 = vmatpush.msra.mxu0 0.0
        %1137 = vmatpush.msra.mxu0 0.0
        %1138 = vmatpush.msra.mxu0 0.0
        %1139 = vmatpush.msra.mxu0 %v525
        %1140 = vmatpush.msra.mxu0 %v1078
        %1141 = vmatpush.msra.mxu0 %v1076
        %1142 = vmatmul.f32.gmra.mxu0 %v1098
        %v1143 = vpop.f32.mrf.mxu0
        %v1144 = vadd.f32 %v1121, %v1143
        %1145 = vmatmul.f32.gmra.mxu0 %v1101
        %v1146 = vpop.f32.mrf.mxu0
        %v1147 = vadd.f32 %v1124, %v1146
        %1148 = vdwg.mxu0
        %1149 = vmatpush.msra.mxu0 %v1057
        %1150 = vmatpush.msra.mxu0 %v1055
        %1151 = vmatpush.msra.mxu0 %v1035
        %1152 = vmatpush.msra.mxu0 %v1033
        %1153 = vmatpush.msra.mxu0 %v1013
        %1154 = vmatpush.msra.mxu0 %v1011
        %1155 = vmatpush.msra.mxu0 %v991
        %1156 = vmatpush.msra.mxu0 %v989
        %1157 = vmatpush.msra.mxu0 %v987
        %1158 = vmatpush.msra.mxu0 %v985
        %1159 = vmatpush.msra.mxu0 %v965
        %1160 = vmatpush.msra.mxu0 %v963
        %1161 = vmatpush.msra.mxu0 %v943
        %1162 = vmatpush.msra.mxu0 %v941
        %1163 = vmatpush.msra.mxu0 %v921
        %1164 = vmatpush.msra.mxu0 %v919
        %1165 = vmatmul.f32.gmra.mxu0 %v1080
        %v1166 = vpop.f32.mrf.mxu0
        %v1167 = vadd.f32 %v1089, %v1166
        %1168 = vmatmul.f32.gmra.mxu0 %v1082
        %v1169 = vpop.f32.mrf.mxu0
        %v1170 = vadd.f32 %v1094, %v1169
        %1171 = vdwg.mxu0
        %1172 = vmatpush.msra.mxu0 0.0
        %1173 = vmatpush.msra.mxu0 0.0
        %1174 = vmatpush.msra.mxu0 0.0
        %1175 = vmatpush.msra.mxu0 0.0
        %1176 = vmatpush.msra.mxu0 0.0
        %1177 = vmatpush.msra.mxu0 0.0
        %1178 = vmatpush.msra.mxu0 0.0
        %1179 = vmatpush.msra.mxu0 0.0
        %1180 = vmatpush.msra.mxu0 0.0
        %1181 = vmatpush.msra.mxu0 0.0
        %1182 = vmatpush.msra.mxu0 0.0
        %1183 = vmatpush.msra.mxu0 0.0
        %1184 = vmatpush.msra.mxu0 0.0
        %1185 = vmatpush.msra.mxu0 %v526
        %1186 = vmatpush.msra.mxu0 %v1079
        %1187 = vmatpush.msra.mxu0 %v1077
        %1188 = vmatmul.f32.gmra.mxu0 %v1098
        %v1189 = vpop.f32.mrf.mxu0
        %v1190 = vadd.f32 %v1167, %v1189
        %1191 = vmatmul.f32.gmra.mxu0 %v1101
        %v1192 = vpop.f32.mrf.mxu0
        %v1193 = vadd.f32 %v1170, %v1192
        %1194 = vdwg.mxu0
        %1195 = vst [vmem:[%s439] sm:$0xff] %v1144
        %1196 = vst [vmem:[%s439 + $0x8] sm:$0xff] %v1190
        %1197 = vst [vmem:[%s439 + $0x10] sm:$0xff] %v1147
        %1198 = vst [vmem:[%s439 + $0x18] sm:$0xff] %v1193
        %s1199 = sand.u32 %s261, 1
        %s1200 = scalar_lea.sflag [#allocation4], %s1199
        %s1201 = sand.u32 %s261, 1
        %s1202 = smul.addr %s1201, 32
        %s1203 = scalar_lea.vmem [#allocation8], %s1202
        // Predicated region
        $region73: #{tpu_custom_call.1} parent=59 // pred_check
          %p1204 = pneg %p271
        $region74: #{tpu_custom_call.1} parent=59 // pred_check_branch
          %1206 = sbr.rel (%p1204) target = $region76
        $region75: #{tpu_custom_call.1} parent=59 // pred_region
          %1208 = vsyncadd %s1200, 0
          %s1209 = smul.addr %s28, 4
          %s1210 = smul.addr %s1209, 8
          %s1211 = scalar_lea.hbm %s10, %s1210
          %s1212 = sshll.u32 %s1203, 4
          %s1213 = int_to_ptr.vmem [resolvable:$true] %s1212
          %s1214 = sshll.u32 %s1211, 4
          %s1215 = int_to_ptr.hbm [resolvable:$true] %s1214
          %1220 = dma.vmem_to_hbm [thread:$0]  %s1213, 512, %s1215, %s1200, 256, 256, 16
        $region76: #{tpu_custom_call.1} parent=59 // pred_fallthru
          _
      $region60: #{tpu_custom_call.1} parent=5 // pred_fallthru
        _
      %p1221 = scmp.le.s32.totalorder 2, %s23
      // Predicated region
      $region77: #{tpu_custom_call.1} parent=5 // pred_check
        %p1222 = pneg %p1221
      $region78: #{tpu_custom_call.1} parent=5 // pred_check_branch
        %1224 = sbr.rel (%p1222) target = $region80
      $region79: #{tpu_custom_call.1} parent=5 // pred_region
        %s1225 = ssub.s32 %s23, 2
        // Predicated region
        $region81: #{tpu_custom_call.1} parent=79 // pred_check
          %p1226 = pneg %p277
        $region82: #{tpu_custom_call.1} parent=79 // pred_check_branch
          %1228 = sbr.rel (%p1226) target = $region84
        $region83: #{tpu_custom_call.1} parent=79 // pred_region
          %s1229 = sand.u32 %s262, 1
          %s1230 = scalar_lea.sflag [#allocation4], %s1229
          %s1231 = sand.u32 %s262, 1
          %s1232 = smul.addr %s1231, 32
          %s1233 = scalar_lea.vmem [#allocation8], %s1232
          %1235 = dma.done %s1230, 512
        $region84: #{tpu_custom_call.1} parent=79 // pred_fallthru
          _
      $region80: #{tpu_custom_call.1} parent=5 // pred_fallthru
        _
    $region6: #{tpu_custom_call.1} parent=1 // loop_footer
      %s27 = sadd.s32 1, %s23
    $region7: #{tpu_custom_call.1} parent=1 // loop_footer_branch
      %22 = sbr.rel target = $region3
    $region8: #{tpu_custom_call.1} parent=1 // loop_exit
      _
    %1236 = vsyncpa [#allocation3], 1
    %s1237 = scalar_lea.sflag [#allocation3], 1
    %1238 = vsyncpa %s1237, 1
    %1239 = vsyncpa [#allocation6], 1
    %1240 = vsyncpa [#allocation4], 1
    %s1241 = scalar_lea.sflag [#allocation4], 1
    %1242 = vsyncpa %s1241, 1

</llo_original>
